<compile_context>
chip_gen: v6e
topology: v6e:2x2x1
jax: 0.10.0
libtpu: 0.0.40
codegen_flags: <defaults>
</compile_context>

<pallas_src>
import math

import jax
import jax.numpy as jnp
from jax.experimental import pallas as pl
from jax.experimental.pallas import tpu as pltpu

# ---- model hyper-params (small, consistent with the module) ----
B = 2        # batch
S = 8        # sequence length
D = 32       # d_model
H = 4        # num_heads
DK = D // H  # d_k
DFF = 64     # d_ff
EPS = 1e-6
NEG = -1000000000.0


def _layernorm(v, alpha, beta):
    # torch: mean over last dim, unbiased std (divide by D-1), (std + eps) denom.
    mean = jnp.mean(v, axis=-1, keepdims=True)
    centered = v - mean
    var = jnp.sum(centered * centered, axis=-1, keepdims=True) * (1.0 / (D - 1))
    inv = pl.reciprocal(jnp.sqrt(var) + EPS, approx=False)   # narrow column; exact
    return alpha * centered * inv + beta


def _encoder_block_kernel(
    x_ref, mask_ref,
    wqkv_ref, bqkv_ref, wo_ref, bo_ref,
    ln1a_ref, ln1b_ref, ln2a_ref, ln2b_ref,
    w1_ref, b1_ref, w2_ref, b2_ref,
    out_ref,
):
    x = x_ref[...].astype(jnp.float32)                       # (B*S, D)

    # mask==0 test + head broadcast computed exactly once
    masked = mask_ref[...] == 0.0                            # (B, S, S) bool
    masked_bh = jnp.broadcast_to(
        masked[:, None, :, :], (B, H, S, S)).reshape(B * H, S, S)

    # ---- residual connection 1: self-attention on LN1(x) -------------------
    y = _layernorm(x, ln1a_ref[...], ln1b_ref[...])

    # fused QKV projection: one (B*S, D) @ (D, 3D) matmul.
    # The 1/sqrt(d_k) score scale is pre-folded into the Q columns on the host.
    qkv = jnp.dot(y, wqkv_ref[...], preferred_element_type=jnp.float32) + bqkv_ref[...]
    q = qkv[:, 0 * D:1 * D]
    k = qkv[:, 1 * D:2 * D]
    v = qkv[:, 2 * D:3 * D]

    def split_heads(t):   # (B*S, D) -> (B*H, S, DK); matches .view(B,S,H,DK).transpose(1,2)
        return jnp.transpose(t.reshape(B, S, H, DK), (0, 2, 1, 3)).reshape(B * H, S, DK)

    qh = split_heads(q)
    kh = split_heads(k)
    vh = split_heads(v)

    # batched over B*H in a single contraction; contraction on last dims -> no
    # explicit kh.T transpose through the XLU.
    scores = jnp.einsum('bqd,bkd->bqk', qh, kh,
                        preferred_element_type=jnp.float32)  # (B*H, S, S)
    scores = jnp.where(masked_bh, NEG, scores)               # masked_fill(-1e9)
    m = jnp.max(scores, axis=-1, keepdims=True)
    p = jnp.exp(scores - m)
    p = p * pl.reciprocal(jnp.sum(p, axis=-1, keepdims=True), approx=True)
    ctx = jnp.einsum('bqk,bkd->bqd', p, vh,
                     preferred_element_type=jnp.float32)     # (B*H, S, DK)

    # merge heads: (B*H, S, DK) -> (B*S, D), head-major feature order
    attn = jnp.transpose(ctx.reshape(B, H, S, DK), (0, 2, 1, 3)).reshape(B * S, D)

    attn = jnp.dot(attn, wo_ref[...], preferred_element_type=jnp.float32) + bo_ref[...]
    x1 = x + attn                                            # residual 1 (dropout = identity)

    # ---- residual connection 2: feed-forward on LN2(x1) ---------------------
    y2 = _layernorm(x1, ln2a_ref[...], ln2b_ref[...])
    hdn = jnp.dot(y2, w1_ref[...], preferred_element_type=jnp.float32) + b1_ref[...]
    hdn = jnp.maximum(hdn, 0.0)
    ff = jnp.dot(hdn, w2_ref[...], preferred_element_type=jnp.float32) + b2_ref[...]

    out_ref[...] = (x1 + ff).astype(out_ref.dtype)


def encoder_block(x, mask, params):
    """x: (B, S, D) f32; mask: (B, 1, S, S) f32; params: dict of f32 arrays."""
    assert x.shape == (B, S, D)
    assert mask.shape == (B, 1, S, S)

    x2 = x.reshape(B * S, D)                       # fold batch into the row axis
    mask2 = mask.reshape(B, S, S)

    # host-side QKV fusion: (D, 3D) weight, (1, 3D) bias; fold 1/sqrt(d_k) into Q.
    scale = 1.0 / math.sqrt(DK)
    wqkv = jnp.concatenate(
        [params["wq"] * scale, params["wk"], params["wv"]], axis=1)
    bqkv = jnp.concatenate(
        [params["bq"] * scale, params["bk"], params["bv"]], axis=1)

    weights = (
        wqkv, bqkv, params["wo"], params["bo"],
        params["ln1_a"], params["ln1_b"], params["ln2_a"], params["ln2_b"],
        params["w1"], params["b1"], params["w2"], params["b2"],
    )

    # Single TensorCore invocation; everything staged into VMEM explicitly.
    n_in = 2 + len(weights)
    out = pl.pallas_call(
        _encoder_block_kernel,
        out_shape=jax.ShapeDtypeStruct((B * S, D), x.dtype),
        in_specs=[pl.BlockSpec(memory_space=pltpu.MemorySpace.VMEM)
                  for _ in range(n_in)],
        out_specs=pl.BlockSpec(memory_space=pltpu.MemorySpace.VMEM),
    )(x2, mask2, *weights)

    return out.reshape(B, S, D)


def make_params(key):
    """Deterministic synthetic weights. Linear weights stored as (in, out)
    (transposed vs PyTorch's (out, in)) so kernels compute y @ W + b."""
    ks = jax.random.split(key, 12)
    sc = 0.05
    return {
        "wq": jax.random.normal(ks[0], (D, D), jnp.float32) * sc,
        "bq": jax.random.normal(ks[1], (1, D), jnp.float32) * sc,
        "wk": jax.random.normal(ks[2], (D, D), jnp.float32) * sc,
        "bk": jax.random.normal(ks[3], (1, D), jnp.float32) * sc,
        "wv": jax.random.normal(ks[4], (D, D), jnp.float32) * sc,
        "bv": jax.random.normal(ks[5], (1, D), jnp.float32) * sc,
        "wo": jax.random.normal(ks[6], (D, D), jnp.float32) * sc,
        "bo": jax.random.normal(ks[7], (1, D), jnp.float32) * sc,
        "ln1_a": jnp.ones((1, D), jnp.float32),
        "ln1_b": jnp.zeros((1, D), jnp.float32),
        "ln2_a": jnp.ones((1, D), jnp.float32),
        "ln2_b": jnp.zeros((1, D), jnp.float32),
        "w1": jax.random.normal(ks[8], (D, DFF), jnp.float32) * sc,
        "b1": jax.random.normal(ks[9], (1, DFF), jnp.float32) * sc,
        "w2": jax.random.normal(ks[10], (DFF, D), jnp.float32) * sc,
        "b2": jax.random.normal(ks[11], (1, D), jnp.float32) * sc,
    }


def encoder_block_reference(x, mask, params):
    """Pure-JAX reference mirroring the PyTorch module (eval mode)."""
    def ln(v, a, b):
        mean = v.mean(-1, keepdims=True)
        std = jnp.sqrt(((v - mean) ** 2).sum(-1, keepdims=True) / (D - 1))
        return a * (v - mean) / (std + EPS) + b

    y = ln(x, params["ln1_a"], params["ln1_b"])
    q = y @ params["wq"] + params["bq"]
    k = y @ params["wk"] + params["bk"]
    v = y @ params["wv"] + params["bv"]

    def heads(t):  # (B,S,D) -> (B,H,S,DK)
        return t.reshape(B, S, H, DK).transpose(0, 2, 1, 3)

    qh, kh, vh = heads(q), heads(k), heads(v)
    sc = jnp.einsum('bhqd,bhkd->bhqk', qh, kh) / math.sqrt(DK)
    sc = jnp.where(mask == 0, NEG, sc)
    p = jax.nn.softmax(sc, axis=-1)
    ctx = jnp.einsum('bhqk,bhkd->bhqd', p, vh)
    ctx = ctx.transpose(0, 2, 1, 3).reshape(B, S, D)
    x1 = x + (ctx @ params["wo"] + params["bo"])
    y2 = ln(x1, params["ln2_a"], params["ln2_b"])
    ff = jnp.maximum(y2 @ params["w1"] + params["b1"], 0.0) @ params["w2"] + params["b2"]
    return x1 + ff


if __name__ == "__main__":
    key = jax.random.PRNGKey(0)
    kx, kp = jax.random.split(key)
    x = jax.random.normal(kx, (B, S, D), jnp.float32)
    # padding-style mask: last two key positions masked out for every query
    key_valid = (jnp.arange(S) < S - 2).astype(jnp.float32)          # (S,)
    mask = jnp.broadcast_to(key_valid[None, None, None, :], (B, 1, S, S))
    params = make_params(kp)

    out = encoder_block(x, mask, params)
    jax.block_until_ready(out)
    assert out.shape == (B, S, D)

    ref = encoder_block_reference(x, mask, params)
    assert jnp.allclose(out, ref, atol=1e-3, rtol=1e-3), "kernel/reference mismatch"

    print("KERNEL_OK")
</pallas_src>

<mosaic_0001>
module attributes {stable_mosaic.version = 11 : i64} {
  func.func @_encoder_block_kernel(%arg0: memref<16x32xf32, #tpu.memory_space<vmem>>, %arg1: memref<2x8x8xf32, #tpu.memory_space<vmem>>, %arg2: memref<32x96xf32, #tpu.memory_space<vmem>>, %arg3: memref<1x96xf32, #tpu.memory_space<vmem>>, %arg4: memref<32x32xf32, #tpu.memory_space<vmem>>, %arg5: memref<1x32xf32, #tpu.memory_space<vmem>>, %arg6: memref<1x32xf32, #tpu.memory_space<vmem>>, %arg7: memref<1x32xf32, #tpu.memory_space<vmem>>, %arg8: memref<1x32xf32, #tpu.memory_space<vmem>>, %arg9: memref<1x32xf32, #tpu.memory_space<vmem>>, %arg10: memref<32x64xf32, #tpu.memory_space<vmem>>, %arg11: memref<1x64xf32, #tpu.memory_space<vmem>>, %arg12: memref<64x32xf32, #tpu.memory_space<vmem>>, %arg13: memref<1x32xf32, #tpu.memory_space<vmem>>, %arg14: memref<16x32xf32, #tpu.memory_space<vmem>>) attributes {dimension_semantics = [], scalar_prefetch = 0 : i64, scratch_operands = 0 : i64, tpu.core_type = #tpu.core_type<tc>} {
    %c0 = arith.constant 0 : index
    %c0_0 = arith.constant 0 : index
    %0 = vector.load %arg0[%c0, %c0_0] : memref<16x32xf32, #tpu.memory_space<vmem>>, vector<16x32xf32>
    %c0_1 = arith.constant 0 : index
    %c0_2 = arith.constant 0 : index
    %c0_3 = arith.constant 0 : index
    %1 = vector.load %arg1[%c0_1, %c0_2, %c0_3] : memref<2x8x8xf32, #tpu.memory_space<vmem>>, vector<2x8x8xf32>
    %cst = arith.constant 0.000000e+00 : f32
    %2 = vector.broadcast %cst : f32 to vector<2x8x8xf32>
    %3 = arith.cmpf oeq, %1, %2 : vector<2x8x8xf32>
    %4 = vector.shape_cast %3 : vector<2x8x8xi1> to vector<2x1x8x8xi1>
    %5 = vector.shape_cast %4 : vector<2x1x8x8xi1> to vector<2x1x8x8xi1>
    %6 = vector.broadcast %5 : vector<2x1x8x8xi1> to vector<2x4x8x8xi1>
    %7 = vector.shape_cast %6 : vector<2x4x8x8xi1> to vector<8x8x8xi1>
    %c0_4 = arith.constant 0 : index
    %c0_5 = arith.constant 0 : index
    %8 = vector.load %arg6[%c0_4, %c0_5] : memref<1x32xf32, #tpu.memory_space<vmem>>, vector<1x32xf32>
    %c0_6 = arith.constant 0 : index
    %c0_7 = arith.constant 0 : index
    %9 = vector.load %arg7[%c0_6, %c0_7] : memref<1x32xf32, #tpu.memory_space<vmem>>, vector<1x32xf32>
    %cst_8 = arith.constant dense<0.000000e+00> : vector<16xf32>
    %10 = vector.multi_reduction <add>, %0, %cst_8 [1] : vector<16x32xf32> to vector<16xf32>
    %11 = vector.shape_cast %10 : vector<16xf32> to vector<16x1xf32>
    %cst_9 = arith.constant 3.200000e+01 : f32
    %12 = vector.broadcast %cst_9 : f32 to vector<16x1xf32>
    %13 = arith.divf %11, %12 : vector<16x1xf32>
    %14 = vector.broadcast %13 : vector<16x1xf32> to vector<16x32xf32>
    %15 = arith.subf %0, %14 : vector<16x32xf32>
    %16 = arith.mulf %15, %15 : vector<16x32xf32>
    %cst_10 = arith.constant dense<0.000000e+00> : vector<16xf32>
    %17 = vector.multi_reduction <add>, %16, %cst_10 [1] : vector<16x32xf32> to vector<16xf32>
    %18 = vector.shape_cast %17 : vector<16xf32> to vector<16x1xf32>
    %cst_11 = arith.constant 0.0322580636 : f32
    %19 = vector.broadcast %cst_11 : f32 to vector<16x1xf32>
    %20 = arith.mulf %18, %19 : vector<16x1xf32>
    %21 = math.sqrt %20 : vector<16x1xf32>
    %cst_12 = arith.constant 9.99999997E-7 : f32
    %22 = vector.broadcast %cst_12 : f32 to vector<16x1xf32>
    %23 = arith.addf %21, %22 : vector<16x1xf32>
    %24 = tpu.reciprocal %23 : vector<16x1xf32> -> vector<16x1xf32>
    %25 = vector.broadcast %8 : vector<1x32xf32> to vector<16x32xf32>
    %26 = arith.mulf %25, %15 : vector<16x32xf32>
    %27 = vector.broadcast %24 : vector<16x1xf32> to vector<16x32xf32>
    %28 = arith.mulf %26, %27 : vector<16x32xf32>
    %29 = vector.broadcast %9 : vector<1x32xf32> to vector<16x32xf32>
    %30 = arith.addf %28, %29 : vector<16x32xf32>
    %c0_13 = arith.constant 0 : index
    %c0_14 = arith.constant 0 : index
    %31 = vector.load %arg2[%c0_13, %c0_14] : memref<32x96xf32, #tpu.memory_space<vmem>>, vector<32x96xf32>
    %cst_15 = arith.constant dense<0.000000e+00> : vector<16x96xf32>
    %32 = tpu.matmul %30, %31, %cst_15 {dimension_numbers = #tpu.dot_dimension_numbers<[1], [0], [0], [1], [0, 0, 1, 1], [], []>} : vector<16x32xf32>, vector<32x96xf32>, vector<16x96xf32> -> vector<16x96xf32>
    %c0_16 = arith.constant 0 : index
    %c0_17 = arith.constant 0 : index
    %33 = vector.load %arg3[%c0_16, %c0_17] : memref<1x96xf32, #tpu.memory_space<vmem>>, vector<1x96xf32>
    %34 = vector.broadcast %33 : vector<1x96xf32> to vector<16x96xf32>
    %35 = arith.addf %32, %34 : vector<16x96xf32>
    %36 = vector.extract_strided_slice %35 {offsets = [0, 0], sizes = [16, 32], strides = [1, 1]} : vector<16x96xf32> to vector<16x32xf32>
    %37 = vector.extract_strided_slice %35 {offsets = [0, 32], sizes = [16, 32], strides = [1, 1]} : vector<16x96xf32> to vector<16x32xf32>
    %38 = vector.extract_strided_slice %35 {offsets = [0, 64], sizes = [16, 32], strides = [1, 1]} : vector<16x96xf32> to vector<16x32xf32>
    %39 = vector.shape_cast %36 : vector<16x32xf32> to vector<2x8x4x8xf32>
    %40 = tpu.transpose %39, [0, 2, 1, 3] : vector<2x8x4x8xf32> -> vector<2x4x8x8xf32>
    %41 = vector.shape_cast %40 : vector<2x4x8x8xf32> to vector<8x8x8xf32>
    %42 = vector.shape_cast %37 : vector<16x32xf32> to vector<2x8x4x8xf32>
    %43 = tpu.transpose %42, [0, 2, 1, 3] : vector<2x8x4x8xf32> -> vector<2x4x8x8xf32>
    %44 = vector.shape_cast %43 : vector<2x4x8x8xf32> to vector<8x8x8xf32>
    %45 = vector.shape_cast %38 : vector<16x32xf32> to vector<2x8x4x8xf32>
    %46 = tpu.transpose %45, [0, 2, 1, 3] : vector<2x8x4x8xf32> -> vector<2x4x8x8xf32>
    %47 = vector.shape_cast %46 : vector<2x4x8x8xf32> to vector<8x8x8xf32>
    "tpu.trace_start"() <{level = 10 : i32, message = "bqd,bkd->bqk"}> : () -> ()
    %cst_18 = arith.constant dense<0.000000e+00> : vector<8x8x8xf32>
    %48 = tpu.matmul %41, %44, %cst_18 {dimension_numbers = #tpu.dot_dimension_numbers<[2], [2], [1], [1], [0, 0, 0, 1, 1, 1], [0], [0]>} : vector<8x8x8xf32>, vector<8x8x8xf32>, vector<8x8x8xf32> -> vector<8x8x8xf32>
    %cst_19 = arith.constant -1.000000e+09 : f32
    "tpu.trace_stop"() : () -> ()
    %49 = vector.broadcast %cst_19 : f32 to vector<8x8x8xf32>
    %50 = arith.select %7, %49, %48 : vector<8x8x8xi1>, vector<8x8x8xf32>
    %cst_20 = arith.constant dense<0xFF800000> : vector<8x8xf32>
    %51 = vector.multi_reduction <maximumf>, %50, %cst_20 [2] : vector<8x8x8xf32> to vector<8x8xf32>
    %52 = vector.shape_cast %51 : vector<8x8xf32> to vector<8x8x1xf32>
    %53 = vector.broadcast %52 : vector<8x8x1xf32> to vector<8x8x8xf32>
    %54 = arith.subf %50, %53 : vector<8x8x8xf32>
    %55 = math.exp %54 : vector<8x8x8xf32>
    %cst_21 = arith.constant dense<0.000000e+00> : vector<8x8xf32>
    %56 = vector.multi_reduction <add>, %55, %cst_21 [2] : vector<8x8x8xf32> to vector<8x8xf32>
    %57 = vector.shape_cast %56 : vector<8x8xf32> to vector<8x8x1xf32>
    %58 = tpu.reciprocal %57 {approx = true} : vector<8x8x1xf32> -> vector<8x8x1xf32>
    %59 = vector.broadcast %58 : vector<8x8x1xf32> to vector<8x8x8xf32>
    %60 = arith.mulf %55, %59 : vector<8x8x8xf32>
    "tpu.trace_start"() <{level = 10 : i32, message = "bqk,bkd->bqd"}> : () -> ()
    %cst_22 = arith.constant dense<0.000000e+00> : vector<8x8x8xf32>
    %61 = tpu.matmul %60, %47, %cst_22 {dimension_numbers = #tpu.dot_dimension_numbers<[2], [1], [1], [2], [0, 0, 0, 1, 1, 2], [0], [0]>} : vector<8x8x8xf32>, vector<8x8x8xf32>, vector<8x8x8xf32> -> vector<8x8x8xf32>
    "tpu.trace_stop"() : () -> ()
    %62 = vector.shape_cast %61 : vector<8x8x8xf32> to vector<2x4x8x8xf32>
    %63 = tpu.transpose %62, [0, 2, 1, 3] : vector<2x4x8x8xf32> -> vector<2x8x4x8xf32>
    %64 = vector.shape_cast %63 : vector<2x8x4x8xf32> to vector<16x32xf32>
    %c0_23 = arith.constant 0 : index
    %c0_24 = arith.constant 0 : index
    %65 = vector.load %arg4[%c0_23, %c0_24] : memref<32x32xf32, #tpu.memory_space<vmem>>, vector<32x32xf32>
    %cst_25 = arith.constant dense<0.000000e+00> : vector<16x32xf32>
    %66 = tpu.matmul %64, %65, %cst_25 {dimension_numbers = #tpu.dot_dimension_numbers<[1], [0], [0], [1], [0, 0, 1, 1], [], []>} : vector<16x32xf32>, vector<32x32xf32>, vector<16x32xf32> -> vector<16x32xf32>
    %c0_26 = arith.constant 0 : index
    %c0_27 = arith.constant 0 : index
    %67 = vector.load %arg5[%c0_26, %c0_27] : memref<1x32xf32, #tpu.memory_space<vmem>>, vector<1x32xf32>
    %68 = vector.broadcast %67 : vector<1x32xf32> to vector<16x32xf32>
    %69 = arith.addf %66, %68 : vector<16x32xf32>
    %70 = arith.addf %0, %69 : vector<16x32xf32>
    %c0_28 = arith.constant 0 : index
    %c0_29 = arith.constant 0 : index
    %71 = vector.load %arg8[%c0_28, %c0_29] : memref<1x32xf32, #tpu.memory_space<vmem>>, vector<1x32xf32>
    %c0_30 = arith.constant 0 : index
    %c0_31 = arith.constant 0 : index
    %72 = vector.load %arg9[%c0_30, %c0_31] : memref<1x32xf32, #tpu.memory_space<vmem>>, vector<1x32xf32>
    %cst_32 = arith.constant dense<0.000000e+00> : vector<16xf32>
    %73 = vector.multi_reduction <add>, %70, %cst_32 [1] : vector<16x32xf32> to vector<16xf32>
    %74 = vector.shape_cast %73 : vector<16xf32> to vector<16x1xf32>
    %cst_33 = arith.constant 3.200000e+01 : f32
    %75 = vector.broadcast %cst_33 : f32 to vector<16x1xf32>
    %76 = arith.divf %74, %75 : vector<16x1xf32>
    %77 = vector.broadcast %76 : vector<16x1xf32> to vector<16x32xf32>
    %78 = arith.subf %70, %77 : vector<16x32xf32>
    %79 = arith.mulf %78, %78 : vector<16x32xf32>
    %cst_34 = arith.constant dense<0.000000e+00> : vector<16xf32>
    %80 = vector.multi_reduction <add>, %79, %cst_34 [1] : vector<16x32xf32> to vector<16xf32>
    %81 = vector.shape_cast %80 : vector<16xf32> to vector<16x1xf32>
    %cst_35 = arith.constant 0.0322580636 : f32
    %82 = vector.broadcast %cst_35 : f32 to vector<16x1xf32>
    %83 = arith.mulf %81, %82 : vector<16x1xf32>
    %84 = math.sqrt %83 : vector<16x1xf32>
    %cst_36 = arith.constant 9.99999997E-7 : f32
    %85 = vector.broadcast %cst_36 : f32 to vector<16x1xf32>
    %86 = arith.addf %84, %85 : vector<16x1xf32>
    %87 = tpu.reciprocal %86 : vector<16x1xf32> -> vector<16x1xf32>
    %88 = vector.broadcast %71 : vector<1x32xf32> to vector<16x32xf32>
    %89 = arith.mulf %88, %78 : vector<16x32xf32>
    %90 = vector.broadcast %87 : vector<16x1xf32> to vector<16x32xf32>
    %91 = arith.mulf %89, %90 : vector<16x32xf32>
    %92 = vector.broadcast %72 : vector<1x32xf32> to vector<16x32xf32>
    %93 = arith.addf %91, %92 : vector<16x32xf32>
    %c0_37 = arith.constant 0 : index
    %c0_38 = arith.constant 0 : index
    %94 = vector.load %arg10[%c0_37, %c0_38] : memref<32x64xf32, #tpu.memory_space<vmem>>, vector<32x64xf32>
    %cst_39 = arith.constant dense<0.000000e+00> : vector<16x64xf32>
    %95 = tpu.matmul %93, %94, %cst_39 {dimension_numbers = #tpu.dot_dimension_numbers<[1], [0], [0], [1], [0, 0, 1, 1], [], []>} : vector<16x32xf32>, vector<32x64xf32>, vector<16x64xf32> -> vector<16x64xf32>
    %c0_40 = arith.constant 0 : index
    %c0_41 = arith.constant 0 : index
    %96 = vector.load %arg11[%c0_40, %c0_41] : memref<1x64xf32, #tpu.memory_space<vmem>>, vector<1x64xf32>
    %97 = vector.broadcast %96 : vector<1x64xf32> to vector<16x64xf32>
    %98 = arith.addf %95, %97 : vector<16x64xf32>
    %cst_42 = arith.constant 0.000000e+00 : f32
    %99 = vector.broadcast %cst_42 : f32 to vector<16x64xf32>
    %100 = arith.maximumf %98, %99 : vector<16x64xf32>
    %c0_43 = arith.constant 0 : index
    %c0_44 = arith.constant 0 : index
    %101 = vector.load %arg12[%c0_43, %c0_44] : memref<64x32xf32, #tpu.memory_space<vmem>>, vector<64x32xf32>
    %cst_45 = arith.constant dense<0.000000e+00> : vector<16x32xf32>
    %102 = tpu.matmul %100, %101, %cst_45 {dimension_numbers = #tpu.dot_dimension_numbers<[1], [0], [0], [1], [0, 0, 1, 1], [], []>} : vector<16x64xf32>, vector<64x32xf32>, vector<16x32xf32> -> vector<16x32xf32>
    %c0_46 = arith.constant 0 : index
    %c0_47 = arith.constant 0 : index
    %103 = vector.load %arg13[%c0_46, %c0_47] : memref<1x32xf32, #tpu.memory_space<vmem>>, vector<1x32xf32>
    %104 = vector.broadcast %103 : vector<1x32xf32> to vector<16x32xf32>
    %105 = arith.addf %102, %104 : vector<16x32xf32>
    %106 = arith.addf %70, %105 : vector<16x32xf32>
    %c0_48 = arith.constant 0 : index
    %c0_49 = arith.constant 0 : index
    %107 = vector.load %arg14[%c0_48, %c0_49] : memref<16x32xf32, #tpu.memory_space<vmem>>, vector<16x32xf32>
    tpu.vector_store %arg14[%c0_48, %c0_49], %106 {strides = array<i32>} : memref<16x32xf32, #tpu.memory_space<vmem>>, vector<16x32xf32>,
    return
  }
}

</mosaic_0001>

<llo_original>
// kernel: tpu_custom_call.1
$region0: #{tpu_custom_call.1}
  #allocation0 [shape = 'u32[]', space=smem, size = 0x4, offset = 0x4, fixed_abs, tag = 'smem constant byte address 0x4 - core index']
  #allocation1 [shape = 'u32[144,128]{1,0:T(1,128)}', space=vmem, size = 0x12000, scoped, tag = 'internal scratch']
  %s0 = inlined_call_operand.hbm [shape: f32[16,32], index: 0, kind: input, shape index: {}]
  %s1 = inlined_call_operand.hbm [shape: f32[2,8,8], index: 1, kind: input, shape index: {}]
  %s2 = inlined_call_operand.vmem [shape: f32[32,96], index: 2, kind: input, shape index: {}]
  %s3 = inlined_call_operand.vmem [shape: f32[1,96], index: 3, kind: input, shape index: {}]
  %s4 = inlined_call_operand.vmem [shape: f32[32,32], index: 4, kind: input, shape index: {}]
  %s5 = inlined_call_operand.vmem [shape: f32[1,32], index: 5, kind: input, shape index: {}]
  %s6 = inlined_call_operand.vmem [shape: f32[1,32], index: 6, kind: input, shape index: {}]
  %s7 = inlined_call_operand.vmem [shape: f32[1,32], index: 7, kind: input, shape index: {}]
  %s8 = inlined_call_operand.vmem [shape: f32[1,32], index: 8, kind: input, shape index: {}]
  %s9 = inlined_call_operand.vmem [shape: f32[1,32], index: 9, kind: input, shape index: {}]
  %s10 = inlined_call_operand.vmem [shape: f32[32,64], index: 10, kind: input, shape index: {}]
  %s11 = inlined_call_operand.vmem [shape: f32[1,64], index: 11, kind: input, shape index: {}]
  %s12 = inlined_call_operand.vmem [shape: f32[64,32], index: 12, kind: input, shape index: {}]
  %s13 = inlined_call_operand.vmem [shape: f32[1,32], index: 13, kind: input, shape index: {}]
  %s14 = inlined_call_operand.hbm [shape: f32[16,32], index: 14, kind: output, shape index: {}]
  %s15 = sld [smem:[#allocation0]]
  $region74: #{tpu_custom_call.1} parent=0
    _
  %s17 = ssub.s32 1, %s15
  %s18 = scalar_select 0, %s17, %s15
  $region1: #{tpu_custom_call.1} parent=0
    #allocation2 [shape = 'u8[8192]{0}', space=vmem, size = 0x2000, scoped, tag = 'input window, operand 0, single buffered']
    #allocation3 [shape = 's32[1]{0}', space=sflag, size = 0x4, scoped, tag = 'scoped memory for tpu_custom_call.1']
    #allocation4 [shape = 's32[1]{0}', space=sflag, size = 0x4, scoped, tag = 'scoped memory for tpu_custom_call.1']
    #allocation5 [shape = 'u8[8192]{0}', space=vmem, size = 0x2000, scoped, tag = 'input window, operand 1, single buffered']
    #allocation6 [shape = 's32[1]{0}', space=sflag, size = 0x4, scoped, tag = 'scoped memory for tpu_custom_call.1']
    #allocation7 [shape = 'u8[8192]{0}', space=vmem, size = 0x2000, scoped, tag = 'output window, operand 0, single buffered']
    %19 = vsyncpa [#allocation3], 0
    %20 = vsyncpa [#allocation6], 0
    %21 = vsyncpa [#allocation4], 0
    // Predicated region
    $region2: #{tpu_custom_call.1} parent=1 // pred_check
      _
    $region3: #{tpu_custom_call.1} parent=1 // pred_check_branch
      %23 = sbr.rel (0) target = $region5
    $region4: #{tpu_custom_call.1} parent=1 // pred_region
      %s25 = ssub.s32 256, 256
      %26 = vsyncadd [#allocation3], %s25
      %s27 = sshll.u32 [#allocation2], 4
      %s28 = int_to_ptr.vmem [resolvable:$true] %s27
      %33 = dma.hbm_to_vmem [thread:$0]  %s0, 256, %s28, [#allocation3], 128, 128, 8
    $region5: #{tpu_custom_call.1} parent=1 // pred_fallthru
      _
    // Predicated region
    $region6: #{tpu_custom_call.1} parent=1 // pred_check
      _
    $region7: #{tpu_custom_call.1} parent=1 // pred_check_branch
      %35 = sbr.rel (0) target = $region9
    $region8: #{tpu_custom_call.1} parent=1 // pred_region
      %s37 = ssub.s32 256, 256
      %38 = vsyncadd [#allocation6], %s37
      %s39 = sshll.u32 [#allocation5], 4
      %s40 = int_to_ptr.vmem [resolvable:$true] %s39
      %45 = dma.hbm_to_vmem [thread:$0]  %s1, 256, %s40, [#allocation6], 128, 128, 8
    $region9: #{tpu_custom_call.1} parent=1 // pred_fallthru
      _
    // Predicated region
    $region10: #{tpu_custom_call.1} parent=1 // pred_check
      _
    $region11: #{tpu_custom_call.1} parent=1 // pred_check_branch
      %47 = sbr.rel (0) target = $region13
    $region12: #{tpu_custom_call.1} parent=1 // pred_region
      _
    $region13: #{tpu_custom_call.1} parent=1 // pred_fallthru
      _
    // Predicated region
    $region14: #{tpu_custom_call.1} parent=1 // pred_check
      _
    $region15: #{tpu_custom_call.1} parent=1 // pred_check_branch
      %49 = sbr.rel (0) target = $region17
    $region16: #{tpu_custom_call.1} parent=1 // pred_region
      _
    $region17: #{tpu_custom_call.1} parent=1 // pred_fallthru
      _
    // Predicated region
    $region18: #{tpu_custom_call.1} parent=1 // pred_check
      _
    $region19: #{tpu_custom_call.1} parent=1 // pred_check_branch
      %51 = sbr.rel (0) target = $region21
    $region20: #{tpu_custom_call.1} parent=1 // pred_region
      _
    $region21: #{tpu_custom_call.1} parent=1 // pred_fallthru
      _
    // Predicated region
    $region22: #{tpu_custom_call.1} parent=1 // pred_check
      _
    $region23: #{tpu_custom_call.1} parent=1 // pred_check_branch
      %53 = sbr.rel (0) target = $region25
    $region24: #{tpu_custom_call.1} parent=1 // pred_region
      _
    $region25: #{tpu_custom_call.1} parent=1 // pred_fallthru
      _
    // Predicated region
    $region26: #{tpu_custom_call.1} parent=1 // pred_check
      _
    $region27: #{tpu_custom_call.1} parent=1 // pred_check_branch
      %55 = sbr.rel (0) target = $region29
    $region28: #{tpu_custom_call.1} parent=1 // pred_region
      _
    $region29: #{tpu_custom_call.1} parent=1 // pred_fallthru
      _
    // Predicated region
    $region30: #{tpu_custom_call.1} parent=1 // pred_check
      _
    $region31: #{tpu_custom_call.1} parent=1 // pred_check_branch
      %57 = sbr.rel (0) target = $region33
    $region32: #{tpu_custom_call.1} parent=1 // pred_region
      _
    $region33: #{tpu_custom_call.1} parent=1 // pred_fallthru
      _
    // Predicated region
    $region34: #{tpu_custom_call.1} parent=1 // pred_check
      _
    $region35: #{tpu_custom_call.1} parent=1 // pred_check_branch
      %59 = sbr.rel (0) target = $region37
    $region36: #{tpu_custom_call.1} parent=1 // pred_region
      _
    $region37: #{tpu_custom_call.1} parent=1 // pred_fallthru
      _
    // Predicated region
    $region38: #{tpu_custom_call.1} parent=1 // pred_check
      _
    $region39: #{tpu_custom_call.1} parent=1 // pred_check_branch
      %61 = sbr.rel (0) target = $region41
    $region40: #{tpu_custom_call.1} parent=1 // pred_region
      _
    $region41: #{tpu_custom_call.1} parent=1 // pred_fallthru
      _
    // Predicated region
    $region42: #{tpu_custom_call.1} parent=1 // pred_check
      _
    $region43: #{tpu_custom_call.1} parent=1 // pred_check_branch
      %63 = sbr.rel (0) target = $region45
    $region44: #{tpu_custom_call.1} parent=1 // pred_region
      _
    $region45: #{tpu_custom_call.1} parent=1 // pred_fallthru
      _
    // Predicated region
    $region46: #{tpu_custom_call.1} parent=1 // pred_check
      _
    $region47: #{tpu_custom_call.1} parent=1 // pred_check_branch
      %65 = sbr.rel (0) target = $region49
    $region48: #{tpu_custom_call.1} parent=1 // pred_region
      _
    $region49: #{tpu_custom_call.1} parent=1 // pred_fallthru
      _
    // Predicated region
    $region50: #{tpu_custom_call.1} parent=1 // pred_check
      _
    $region51: #{tpu_custom_call.1} parent=1 // pred_check_branch
      %67 = sbr.rel (0) target = $region53
    $region52: #{tpu_custom_call.1} parent=1 // pred_region
      _
    $region53: #{tpu_custom_call.1} parent=1 // pred_fallthru
      _
    // Predicated region
    $region54: #{tpu_custom_call.1} parent=1 // pred_check
      _
    $region55: #{tpu_custom_call.1} parent=1 // pred_check_branch
      %69 = sbr.rel (0) target = $region57
    $region56: #{tpu_custom_call.1} parent=1 // pred_region
      _
    $region57: #{tpu_custom_call.1} parent=1 // pred_fallthru
      _
    // Predicated region
    $region58: #{tpu_custom_call.1} parent=1 // pred_check
      _
    $region59: #{tpu_custom_call.1} parent=1 // pred_check_branch
      %71 = sbr.rel (0) target = $region61
    $region60: #{tpu_custom_call.1} parent=1 // pred_region
      %72 = dma.done [#allocation3], 256
    $region61: #{tpu_custom_call.1} parent=1 // pred_fallthru
      _
    // Predicated region
    $region62: #{tpu_custom_call.1} parent=1 // pred_check
      _
    $region63: #{tpu_custom_call.1} parent=1 // pred_check_branch
      %74 = sbr.rel (0) target = $region65
    $region64: #{tpu_custom_call.1} parent=1 // pred_region
      %75 = dma.done [#allocation6], 256
    $region65: #{tpu_custom_call.1} parent=1 // pred_fallthru
      _
    %v76 = vld [vmem:[#allocation2] sm:$0xff]
    %v77 = vld [vmem:[#allocation2 + $0x8] sm:$0xff]
    %v78 = vld [vmem:[#allocation5] sm:$0xff]
    %v79 = vld [vmem:[#allocation5 + $0x8] sm:$0xff]
    %vm80 = vcmp.eq.f32.partialorder %v78, 0.0
    %vm81 = vcmp.eq.f32.partialorder %v79, 0.0
    %v82 = vsel %vm80, 1, 0
    %v83 = vsel %vm81, 1, 0
    %vm84 = vcmp.eq.s32.totalorder %v82, 1
    %vm85 = vcmp.eq.s32.totalorder %v83, 1
    %v86 = vld [vmem:[%s6] sm:$0x1]
    %v87 = vld [vmem:[%s7] sm:$0x1]
    %vm88 = vcmask 261120
    %v89 = vsel %vm88, %v76, 0.0
    %90 = vadd.xlane.f32.xlu0 %v89
    %v91 = vpop.xlane.xlu0 %90
    %v92 = vsel %vm88, %v77, 0.0
    %93 = vadd.xlane.f32.xlu0 %v92
    %v94 = vpop.xlane.xlu0 %93
    %v95 = vrcp.pop 32.0
    %v96 = vmul.f32 %v91, %v95
    %v97 = vmul.f32 %v94, %v95
    %v98 = vsub.f32 %v76, %v96
    %v99 = vsub.f32 %v77, %v97
    %v100 = vmul.f32 %v98, %v98
    %v101 = vmul.f32 %v99, %v99
    %v102 = vsel %vm88, %v100, 0.0
    %103 = vadd.xlane.f32.xlu0 %v102
    %v104 = vpop.xlane.xlu0 %103
    %v105 = vsel %vm88, %v101, 0.0
    %106 = vadd.xlane.f32.xlu0 %v105
    %v107 = vpop.xlane.xlu0 %106
    %v108 = vmul.f32 %v104, 0.032258064
    %v109 = vmul.f32 %v107, 0.032258064
    %v110 = vrsqrt.pop %v108
    %v111 = vmul.f32 %v108, %v110
    %vm112 = vcmp.eq.f32.partialorder %v108, inf
    %v113 = vsel %vm112, %v108, %v111
    %vm114 = vcmp.eq.f32.partialorder %v108, 0.0
    %v115 = vand.u32 %v108, 2147483648
    %v116 = vsel %vm114, %v115, %v113
    %v117 = vrsqrt.pop %v109
    %v118 = vmul.f32 %v109, %v117
    %vm119 = vcmp.eq.f32.partialorder %v109, inf
    %v120 = vsel %vm119, %v109, %v118
    %vm121 = vcmp.eq.f32.partialorder %v109, 0.0
    %v122 = vand.u32 %v109, 2147483648
    %v123 = vsel %vm121, %v122, %v120
    %v124 = vadd.f32 %v116, 1e-06
    %v125 = vadd.f32 %v123, 1e-06
    %v126 = vrcp.pop %v124
    %v127 = vrcp.pop %v125
    %v129 = vlaneseq
    %v130 = vshrl.u32 %v129, 7
    %v131 = vsub.s32 0, %v130
    %v132 = vrot.slane %v86, %v131
    %v134 = vmul.f32 %v132, %v98
    %v135 = vmul.f32 %v132, %v99
    %v136 = vmul.f32 %v134, %v126
    %v137 = vmul.f32 %v135, %v127
    %v139 = vlaneseq
    %v140 = vshrl.u32 %v139, 7
    %v141 = vsub.s32 0, %v140
    %v142 = vrot.slane %v87, %v141
    %v144 = vadd.f32 %v136, %v142
    %v145 = vadd.f32 %v137, %v142
    %v146 = vld [vmem:[%s2] sm:$0xff]
    %v147 = vld [vmem:[%s2 + $0x8] sm:$0xff]
    %v148 = vld [vmem:[%s2 + $0x10] sm:$0xff]
    %v149 = vld [vmem:[%s2 + $0x18] sm:$0xff]
    %v150 = vld [vmem:[%s3] sm:$0x1]
    %v152 = vlaneseq
    %v153 = vshrl.u32 %v152, 7
    %v154 = vsub.s32 0, %v153
    %v155 = vrot.slane %v150, %v154
    %v158 = vsel %vm88, %v144, 0
    %v161 = vsel %vm88, %v145, 0
    %163 = vmatprep.subr.mxu0 0.0
    %164 = vmatpush1.msra.mxu0 0.0
    %165 = vmatprep.subr.mxu0 0.0
    %166 = vmatpush1.msra.mxu0 0.0
    %167 = vmatprep.subr.mxu0 0.0
    %168 = vmatpush1.msra.mxu0 0.0
    %169 = vmatprep.subr.mxu0 0.0
    %170 = vmatpush1.msra.mxu0 0.0
    %171 = vmatprep.subr.mxu0 0.0
    %172 = vmatpush1.msra.mxu0 0.0
    %173 = vmatprep.subr.mxu0 0.0
    %174 = vmatpush1.msra.mxu0 0.0
    %175 = vmatprep.subr.mxu0 0.0
    %176 = vmatpush1.msra.mxu0 0.0
    %177 = vmatprep.subr.mxu0 0.0
    %178 = vmatpush1.msra.mxu0 0.0
    %179 = vmatprep.subr.mxu0 0.0
    %180 = vmatpush1.msra.mxu0 0.0
    %181 = vmatprep.subr.mxu0 0.0
    %182 = vmatpush1.msra.mxu0 0.0
    %183 = vmatprep.subr.mxu0 0.0
    %184 = vmatpush1.msra.mxu0 0.0
    %185 = vmatprep.subr.mxu0 0.0
    %186 = vmatpush1.msra.mxu0 0.0
    %187 = vmatprep.subr.mxu0 0.0
    %188 = vmatpush1.msra.mxu0 %v149
    %189 = vmatprep.subr.mxu0 0.0
    %190 = vmatpush1.msra.mxu0 %v148
    %191 = vmatprep.subr.mxu0 0.0
    %192 = vmatpush1.msra.mxu0 %v147
    %193 = vmatprep.subr.mxu0 0.0
    %194 = vmatpush1.msra.mxu0 %v146
    %195 = vmatprep.subr.mxu0 0.0
    %196 = vmatpush2.msra.mxu0 0.0
    %197 = vmatprep.subr.mxu0 0.0
    %198 = vmatpush2.msra.mxu0 0.0
    %199 = vmatprep.subr.mxu0 0.0
    %200 = vmatpush2.msra.mxu0 0.0
    %201 = vmatprep.subr.mxu0 0.0
    %202 = vmatpush2.msra.mxu0 0.0
    %203 = vmatprep.subr.mxu0 0.0
    %204 = vmatpush2.msra.mxu0 0.0
    %205 = vmatprep.subr.mxu0 0.0
    %206 = vmatpush2.msra.mxu0 0.0
    %207 = vmatprep.subr.mxu0 0.0
    %208 = vmatpush2.msra.mxu0 0.0
    %209 = vmatprep.subr.mxu0 0.0
    %210 = vmatpush2.msra.mxu0 0.0
    %211 = vmatprep.subr.mxu0 0.0
    %212 = vmatpush2.msra.mxu0 0.0
    %213 = vmatprep.subr.mxu0 0.0
    %214 = vmatpush2.msra.mxu0 0.0
    %215 = vmatprep.subr.mxu0 0.0
    %216 = vmatpush2.msra.mxu0 0.0
    %217 = vmatprep.subr.mxu0 0.0
    %218 = vmatpush2.msra.mxu0 0.0
    %219 = vmatprep.subr.mxu0 0.0
    %220 = vmatpush2.msra.mxu0 0.0
    %221 = vmatprep.subr.mxu0 0.0
    %222 = vmatpush2.msra.mxu0 0.0
    %223 = vmatprep.subr.mxu0 0.0
    %224 = vmatpush2.msra.mxu0 0.0
    %225 = vmatprep.subr.mxu0 0.0
    %226 = vmatpush2.msra.mxu0 0.0
    %227 = vmatprep.mubr.f32.mxu0 0.0
    %228 = vmatmul.mubr.f32.gmra.mxu0 %v158
    %v229 = vpop.f32.mrf.mxu0
    %v230 = vadd.f32 %v155, %v229
    %v231 = vpop.f32.mrf.mxu0
    %232 = vmatprep.mubr.f32.mxu0 0.0
    %233 = vmatmul.mubr.f32.gmra.mxu0 %v161
    %v234 = vpop.f32.mrf.mxu0
    %v235 = vadd.f32 %v155, %v234
    %v236 = vpop.f32.mrf.mxu0
    %237 = vdwg.mxu0
    %240 = vrot.lane.b32.xlu0 %v230, 120
    %v241 = vpop.permute.xlu0 %240
    %242 = vrot.lane.b32.xlu0 %v235, 120
    %v243 = vpop.permute.xlu0 %242
    %246 = vrot.lane.b32.xlu0 %v230, 112
    %v247 = vpop.permute.xlu0 %246
    %248 = vrot.lane.b32.xlu0 %v235, 112
    %v249 = vpop.permute.xlu0 %248
    %252 = vrot.lane.b32.xlu0 %v230, 104
    %v253 = vpop.permute.xlu0 %252
    %254 = vrot.lane.b32.xlu0 %v235, 104
    %v255 = vpop.permute.xlu0 %254
    %v258 = vcombine.low %v230, %v247
    %v259 = vcombine.high %v230, %v247
    %v261 = vunpack.c.l.s4 1983009808
    %v262 = vunpack.c.0.s8 %v261
    %v263 = vlaneseq
    %v264 = vshrl.u32 %v263, 7
    %v265 = vsub.s32 %v262, %v264
    %v266 = vrot.slane %v258, %v265
    %v268 = vunpack.c.l.s4 1983009808
    %v269 = vunpack.c.0.s8 %v268
    %v270 = vlaneseq
    %v271 = vshrl.u32 %v270, 7
    %v272 = vsub.s32 %v269, %v271
    %v273 = vrot.slane %v259, %v272
    %v274 = vcombine.low %v241, %v253
    %v275 = vcombine.high %v241, %v253
    %v277 = vunpack.c.l.s4 1983009808
    %v278 = vunpack.c.0.s8 %v277
    %v279 = vlaneseq
    %v280 = vshrl.u32 %v279, 7
    %v281 = vsub.s32 %v278, %v280
    %v282 = vrot.slane %v274, %v281
    %v284 = vunpack.c.l.s4 1983009808
    %v285 = vunpack.c.0.s8 %v284
    %v286 = vlaneseq
    %v287 = vshrl.u32 %v286, 7
    %v288 = vsub.s32 %v285, %v287
    %v289 = vrot.slane %v275, %v288
    %v290 = vcombine.low %v266, %v282
    %v291 = vcombine.high %v266, %v282
    %v293 = vunpack.c.l.s4 1934713408
    %v294 = vunpack.c.0.s8 %v293
    %v295 = vlaneseq
    %v296 = vshrl.u32 %v295, 7
    %v297 = vsub.s32 %v294, %v296
    %v298 = vrot.slane %v290, %v297
    %v300 = vunpack.c.l.s4 1934713408
    %v301 = vunpack.c.0.s8 %v300
    %v302 = vlaneseq
    %v303 = vshrl.u32 %v302, 7
    %v304 = vsub.s32 %v301, %v303
    %v305 = vrot.slane %v291, %v304
    %v306 = vcombine.low %v273, %v289
    %v307 = vcombine.high %v273, %v289
    %v309 = vunpack.c.l.s4 1934713408
    %v310 = vunpack.c.0.s8 %v309
    %v311 = vlaneseq
    %v312 = vshrl.u32 %v311, 7
    %v313 = vsub.s32 %v310, %v312
    %v314 = vrot.slane %v306, %v313
    %v316 = vunpack.c.l.s4 1934713408
    %v317 = vunpack.c.0.s8 %v316
    %v318 = vlaneseq
    %v319 = vshrl.u32 %v318, 7
    %v320 = vsub.s32 %v317, %v319
    %v321 = vrot.slane %v307, %v320
    %v322 = vcombine.high %v298, 0.0
    %v323 = vcombine.high %v305, 0.0
    %v324 = vcombine.high %v314, 0.0
    %v325 = vcombine.high %v321, 0.0
    %v326 = vcombine.low %v235, %v249
    %v327 = vcombine.high %v235, %v249
    %v329 = vunpack.c.l.s4 1983009808
    %v330 = vunpack.c.0.s8 %v329
    %v331 = vlaneseq
    %v332 = vshrl.u32 %v331, 7
    %v333 = vsub.s32 %v330, %v332
    %v334 = vrot.slane %v326, %v333
    %v336 = vunpack.c.l.s4 1983009808
    %v337 = vunpack.c.0.s8 %v336
    %v338 = vlaneseq
    %v339 = vshrl.u32 %v338, 7
    %v340 = vsub.s32 %v337, %v339
    %v341 = vrot.slane %v327, %v340
    %v342 = vcombine.low %v243, %v255
    %v343 = vcombine.high %v243, %v255
    %v345 = vunpack.c.l.s4 1983009808
    %v346 = vunpack.c.0.s8 %v345
    %v347 = vlaneseq
    %v348 = vshrl.u32 %v347, 7
    %v349 = vsub.s32 %v346, %v348
    %v350 = vrot.slane %v342, %v349
    %v352 = vunpack.c.l.s4 1983009808
    %v353 = vunpack.c.0.s8 %v352
    %v354 = vlaneseq
    %v355 = vshrl.u32 %v354, 7
    %v356 = vsub.s32 %v353, %v355
    %v357 = vrot.slane %v343, %v356
    %v358 = vcombine.low %v334, %v350
    %v359 = vcombine.high %v334, %v350
    %v361 = vunpack.c.l.s4 1934713408
    %v362 = vunpack.c.0.s8 %v361
    %v363 = vlaneseq
    %v364 = vshrl.u32 %v363, 7
    %v365 = vsub.s32 %v362, %v364
    %v366 = vrot.slane %v358, %v365
    %v368 = vunpack.c.l.s4 1934713408
    %v369 = vunpack.c.0.s8 %v368
    %v370 = vlaneseq
    %v371 = vshrl.u32 %v370, 7
    %v372 = vsub.s32 %v369, %v371
    %v373 = vrot.slane %v359, %v372
    %v374 = vcombine.low %v341, %v357
    %v375 = vcombine.high %v341, %v357
    %v377 = vunpack.c.l.s4 1934713408
    %v378 = vunpack.c.0.s8 %v377
    %v379 = vlaneseq
    %v380 = vshrl.u32 %v379, 7
    %v381 = vsub.s32 %v378, %v380
    %v382 = vrot.slane %v374, %v381
    %v384 = vunpack.c.l.s4 1934713408
    %v385 = vunpack.c.0.s8 %v384
    %v386 = vlaneseq
    %v387 = vshrl.u32 %v386, 7
    %v388 = vsub.s32 %v385, %v387
    %v389 = vrot.slane %v375, %v388
    %v390 = vcombine.high %v366, 0.0
    %v391 = vcombine.high %v373, 0.0
    %v392 = vcombine.high %v382, 0.0
    %v393 = vcombine.high %v389, 0.0
    %v394 = vcombine.low %v298, %v305
    %v396 = vunpack.c.l.s4 1983009808
    %v397 = vunpack.c.0.s8 %v396
    %v398 = vlaneseq
    %v399 = vshrl.u32 %v398, 7
    %v400 = vsub.s32 %v397, %v399
    %v401 = vrot.slane %v394, %v400
    %v402 = vcombine.low %v322, %v323
    %v404 = vunpack.c.l.s4 1983009808
    %v405 = vunpack.c.0.s8 %v404
    %v406 = vlaneseq
    %v407 = vshrl.u32 %v406, 7
    %v408 = vsub.s32 %v405, %v407
    %v409 = vrot.slane %v402, %v408
    %v410 = vcombine.low %v314, %v321
    %v412 = vunpack.c.l.s4 1983009808
    %v413 = vunpack.c.0.s8 %v412
    %v414 = vlaneseq
    %v415 = vshrl.u32 %v414, 7
    %v416 = vsub.s32 %v413, %v415
    %v417 = vrot.slane %v410, %v416
    %v418 = vcombine.low %v324, %v325
    %v420 = vunpack.c.l.s4 1983009808
    %v421 = vunpack.c.0.s8 %v420
    %v422 = vlaneseq
    %v423 = vshrl.u32 %v422, 7
    %v424 = vsub.s32 %v421, %v423
    %v425 = vrot.slane %v418, %v424
    %v426 = vcombine.low %v401, %v409
    %v427 = vcombine.high %v401, %v409
    %v429 = vunpack.c.l.s4 1934713408
    %v430 = vunpack.c.0.s8 %v429
    %v431 = vlaneseq
    %v432 = vshrl.u32 %v431, 7
    %v433 = vsub.s32 %v430, %v432
    %v434 = vrot.slane %v426, %v433
    %v436 = vunpack.c.l.s4 1934713408
    %v437 = vunpack.c.0.s8 %v436
    %v438 = vlaneseq
    %v439 = vshrl.u32 %v438, 7
    %v440 = vsub.s32 %v437, %v439
    %v441 = vrot.slane %v427, %v440
    %v442 = vcombine.low %v417, %v425
    %v443 = vcombine.high %v417, %v425
    %v445 = vunpack.c.l.s4 1934713408
    %v446 = vunpack.c.0.s8 %v445
    %v447 = vlaneseq
    %v448 = vshrl.u32 %v447, 7
    %v449 = vsub.s32 %v446, %v448
    %v450 = vrot.slane %v442, %v449
    %v452 = vunpack.c.l.s4 1934713408
    %v453 = vunpack.c.0.s8 %v452
    %v454 = vlaneseq
    %v455 = vshrl.u32 %v454, 7
    %v456 = vsub.s32 %v453, %v455
    %v457 = vrot.slane %v443, %v456
    %v458 = vcombine.low %v434, %v450
    %v459 = vcombine.high %v434, %v450
    %v460 = vcombine.low %v441, %v457
    %v461 = vcombine.high %v441, %v457
    %v462 = vcombine.low %v366, %v373
    %v464 = vunpack.c.l.s4 1983009808
    %v465 = vunpack.c.0.s8 %v464
    %v466 = vlaneseq
    %v467 = vshrl.u32 %v466, 7
    %v468 = vsub.s32 %v465, %v467
    %v469 = vrot.slane %v462, %v468
    %v470 = vcombine.low %v390, %v391
    %v472 = vunpack.c.l.s4 1983009808
    %v473 = vunpack.c.0.s8 %v472
    %v474 = vlaneseq
    %v475 = vshrl.u32 %v474, 7
    %v476 = vsub.s32 %v473, %v475
    %v477 = vrot.slane %v470, %v476
    %v478 = vcombine.low %v382, %v389
    %v480 = vunpack.c.l.s4 1983009808
    %v481 = vunpack.c.0.s8 %v480
    %v482 = vlaneseq
    %v483 = vshrl.u32 %v482, 7
    %v484 = vsub.s32 %v481, %v483
    %v485 = vrot.slane %v478, %v484
    %v486 = vcombine.low %v392, %v393
    %v488 = vunpack.c.l.s4 1983009808
    %v489 = vunpack.c.0.s8 %v488
    %v490 = vlaneseq
    %v491 = vshrl.u32 %v490, 7
    %v492 = vsub.s32 %v489, %v491
    %v493 = vrot.slane %v486, %v492
    %v494 = vcombine.low %v469, %v477
    %v495 = vcombine.high %v469, %v477
    %v497 = vunpack.c.l.s4 1934713408
    %v498 = vunpack.c.0.s8 %v497
    %v499 = vlaneseq
    %v500 = vshrl.u32 %v499, 7
    %v501 = vsub.s32 %v498, %v500
    %v502 = vrot.slane %v494, %v501
    %v504 = vunpack.c.l.s4 1934713408
    %v505 = vunpack.c.0.s8 %v504
    %v506 = vlaneseq
    %v507 = vshrl.u32 %v506, 7
    %v508 = vsub.s32 %v505, %v507
    %v509 = vrot.slane %v495, %v508
    %v510 = vcombine.low %v485, %v493
    %v511 = vcombine.high %v485, %v493
    %v513 = vunpack.c.l.s4 1934713408
    %v514 = vunpack.c.0.s8 %v513
    %v515 = vlaneseq
    %v516 = vshrl.u32 %v515, 7
    %v517 = vsub.s32 %v514, %v516
    %v518 = vrot.slane %v510, %v517
    %v520 = vunpack.c.l.s4 1934713408
    %v521 = vunpack.c.0.s8 %v520
    %v522 = vlaneseq
    %v523 = vshrl.u32 %v522, 7
    %v524 = vsub.s32 %v521, %v523
    %v525 = vrot.slane %v511, %v524
    %v526 = vcombine.low %v502, %v518
    %v527 = vcombine.high %v502, %v518
    %v528 = vcombine.low %v509, %v525
    %v529 = vcombine.high %v509, %v525
    %530 = vrot.lane.b32.xlu0 %v230, 96
    %v531 = vpop.permute.xlu0 %530
    %532 = vrot.lane.b32.xlu0 %v235, 96
    %v533 = vpop.permute.xlu0 %532
    %534 = vrot.lane.b32.xlu0 %v241, 96
    %v535 = vpop.permute.xlu0 %534
    %536 = vrot.lane.b32.xlu0 %v243, 96
    %v537 = vpop.permute.xlu0 %536
    %538 = vrot.lane.b32.xlu0 %v247, 96
    %v539 = vpop.permute.xlu0 %538
    %540 = vrot.lane.b32.xlu0 %v249, 96
    %v541 = vpop.permute.xlu0 %540
    %542 = vrot.lane.b32.xlu0 %v253, 96
    %v543 = vpop.permute.xlu0 %542
    %544 = vrot.lane.b32.xlu0 %v255, 96
    %v545 = vpop.permute.xlu0 %544
    %v554 = vcombine.low %v531, %v539
    %v555 = vcombine.high %v531, %v539
    %v557 = vunpack.c.l.s4 1983009808
    %v558 = vunpack.c.0.s8 %v557
    %v559 = vlaneseq
    %v560 = vshrl.u32 %v559, 7
    %v561 = vsub.s32 %v558, %v560
    %v562 = vrot.slane %v554, %v561
    %v564 = vunpack.c.l.s4 1983009808
    %v565 = vunpack.c.0.s8 %v564
    %v566 = vlaneseq
    %v567 = vshrl.u32 %v566, 7
    %v568 = vsub.s32 %v565, %v567
    %v569 = vrot.slane %v555, %v568
    %v570 = vcombine.low %v535, %v543
    %v571 = vcombine.high %v535, %v543
    %v573 = vunpack.c.l.s4 1983009808
    %v574 = vunpack.c.0.s8 %v573
    %v575 = vlaneseq
    %v576 = vshrl.u32 %v575, 7
    %v577 = vsub.s32 %v574, %v576
    %v578 = vrot.slane %v570, %v577
    %v580 = vunpack.c.l.s4 1983009808
    %v581 = vunpack.c.0.s8 %v580
    %v582 = vlaneseq
    %v583 = vshrl.u32 %v582, 7
    %v584 = vsub.s32 %v581, %v583
    %v585 = vrot.slane %v571, %v584
    %v586 = vcombine.low %v562, %v578
    %v587 = vcombine.high %v562, %v578
    %v589 = vunpack.c.l.s4 1934713408
    %v590 = vunpack.c.0.s8 %v589
    %v591 = vlaneseq
    %v592 = vshrl.u32 %v591, 7
    %v593 = vsub.s32 %v590, %v592
    %v594 = vrot.slane %v586, %v593
    %v596 = vunpack.c.l.s4 1934713408
    %v597 = vunpack.c.0.s8 %v596
    %v598 = vlaneseq
    %v599 = vshrl.u32 %v598, 7
    %v600 = vsub.s32 %v597, %v599
    %v601 = vrot.slane %v587, %v600
    %v602 = vcombine.low %v569, %v585
    %v603 = vcombine.high %v569, %v585
    %v605 = vunpack.c.l.s4 1934713408
    %v606 = vunpack.c.0.s8 %v605
    %v607 = vlaneseq
    %v608 = vshrl.u32 %v607, 7
    %v609 = vsub.s32 %v606, %v608
    %v610 = vrot.slane %v602, %v609
    %v612 = vunpack.c.l.s4 1934713408
    %v613 = vunpack.c.0.s8 %v612
    %v614 = vlaneseq
    %v615 = vshrl.u32 %v614, 7
    %v616 = vsub.s32 %v613, %v615
    %v617 = vrot.slane %v603, %v616
    %v618 = vcombine.high %v594, 0.0
    %v619 = vcombine.high %v601, 0.0
    %v620 = vcombine.high %v610, 0.0
    %v621 = vcombine.high %v617, 0.0
    %v622 = vcombine.low %v533, %v541
    %v623 = vcombine.high %v533, %v541
    %v625 = vunpack.c.l.s4 1983009808
    %v626 = vunpack.c.0.s8 %v625
    %v627 = vlaneseq
    %v628 = vshrl.u32 %v627, 7
    %v629 = vsub.s32 %v626, %v628
    %v630 = vrot.slane %v622, %v629
    %v632 = vunpack.c.l.s4 1983009808
    %v633 = vunpack.c.0.s8 %v632
    %v634 = vlaneseq
    %v635 = vshrl.u32 %v634, 7
    %v636 = vsub.s32 %v633, %v635
    %v637 = vrot.slane %v623, %v636
    %v638 = vcombine.low %v537, %v545
    %v639 = vcombine.high %v537, %v545
    %v641 = vunpack.c.l.s4 1983009808
    %v642 = vunpack.c.0.s8 %v641
    %v643 = vlaneseq
    %v644 = vshrl.u32 %v643, 7
    %v645 = vsub.s32 %v642, %v644
    %v646 = vrot.slane %v638, %v645
    %v648 = vunpack.c.l.s4 1983009808
    %v649 = vunpack.c.0.s8 %v648
    %v650 = vlaneseq
    %v651 = vshrl.u32 %v650, 7
    %v652 = vsub.s32 %v649, %v651
    %v653 = vrot.slane %v639, %v652
    %v654 = vcombine.low %v630, %v646
    %v655 = vcombine.high %v630, %v646
    %v657 = vunpack.c.l.s4 1934713408
    %v658 = vunpack.c.0.s8 %v657
    %v659 = vlaneseq
    %v660 = vshrl.u32 %v659, 7
    %v661 = vsub.s32 %v658, %v660
    %v662 = vrot.slane %v654, %v661
    %v664 = vunpack.c.l.s4 1934713408
    %v665 = vunpack.c.0.s8 %v664
    %v666 = vlaneseq
    %v667 = vshrl.u32 %v666, 7
    %v668 = vsub.s32 %v665, %v667
    %v669 = vrot.slane %v655, %v668
    %v670 = vcombine.low %v637, %v653
    %v671 = vcombine.high %v637, %v653
    %v673 = vunpack.c.l.s4 1934713408
    %v674 = vunpack.c.0.s8 %v673
    %v675 = vlaneseq
    %v676 = vshrl.u32 %v675, 7
    %v677 = vsub.s32 %v674, %v676
    %v678 = vrot.slane %v670, %v677
    %v680 = vunpack.c.l.s4 1934713408
    %v681 = vunpack.c.0.s8 %v680
    %v682 = vlaneseq
    %v683 = vshrl.u32 %v682, 7
    %v684 = vsub.s32 %v681, %v683
    %v685 = vrot.slane %v671, %v684
    %v686 = vcombine.high %v662, 0.0
    %v687 = vcombine.high %v669, 0.0
    %v688 = vcombine.high %v678, 0.0
    %v689 = vcombine.high %v685, 0.0
    %v690 = vcombine.low %v594, %v601
    %v692 = vunpack.c.l.s4 1983009808
    %v693 = vunpack.c.0.s8 %v692
    %v694 = vlaneseq
    %v695 = vshrl.u32 %v694, 7
    %v696 = vsub.s32 %v693, %v695
    %v697 = vrot.slane %v690, %v696
    %v698 = vcombine.low %v618, %v619
    %v700 = vunpack.c.l.s4 1983009808
    %v701 = vunpack.c.0.s8 %v700
    %v702 = vlaneseq
    %v703 = vshrl.u32 %v702, 7
    %v704 = vsub.s32 %v701, %v703
    %v705 = vrot.slane %v698, %v704
    %v706 = vcombine.low %v610, %v617
    %v708 = vunpack.c.l.s4 1983009808
    %v709 = vunpack.c.0.s8 %v708
    %v710 = vlaneseq
    %v711 = vshrl.u32 %v710, 7
    %v712 = vsub.s32 %v709, %v711
    %v713 = vrot.slane %v706, %v712
    %v714 = vcombine.low %v620, %v621
    %v716 = vunpack.c.l.s4 1983009808
    %v717 = vunpack.c.0.s8 %v716
    %v718 = vlaneseq
    %v719 = vshrl.u32 %v718, 7
    %v720 = vsub.s32 %v717, %v719
    %v721 = vrot.slane %v714, %v720
    %v722 = vcombine.low %v697, %v705
    %v723 = vcombine.high %v697, %v705
    %v725 = vunpack.c.l.s4 1934713408
    %v726 = vunpack.c.0.s8 %v725
    %v727 = vlaneseq
    %v728 = vshrl.u32 %v727, 7
    %v729 = vsub.s32 %v726, %v728
    %v730 = vrot.slane %v722, %v729
    %v732 = vunpack.c.l.s4 1934713408
    %v733 = vunpack.c.0.s8 %v732
    %v734 = vlaneseq
    %v735 = vshrl.u32 %v734, 7
    %v736 = vsub.s32 %v733, %v735
    %v737 = vrot.slane %v723, %v736
    %v738 = vcombine.low %v713, %v721
    %v739 = vcombine.high %v713, %v721
    %v741 = vunpack.c.l.s4 1934713408
    %v742 = vunpack.c.0.s8 %v741
    %v743 = vlaneseq
    %v744 = vshrl.u32 %v743, 7
    %v745 = vsub.s32 %v742, %v744
    %v746 = vrot.slane %v738, %v745
    %v748 = vunpack.c.l.s4 1934713408
    %v749 = vunpack.c.0.s8 %v748
    %v750 = vlaneseq
    %v751 = vshrl.u32 %v750, 7
    %v752 = vsub.s32 %v749, %v751
    %v753 = vrot.slane %v739, %v752
    %v754 = vcombine.low %v730, %v746
    %v755 = vcombine.high %v730, %v746
    %v756 = vcombine.low %v737, %v753
    %v757 = vcombine.high %v737, %v753
    %v758 = vcombine.low %v662, %v669
    %v760 = vunpack.c.l.s4 1983009808
    %v761 = vunpack.c.0.s8 %v760
    %v762 = vlaneseq
    %v763 = vshrl.u32 %v762, 7
    %v764 = vsub.s32 %v761, %v763
    %v765 = vrot.slane %v758, %v764
    %v766 = vcombine.low %v686, %v687
    %v768 = vunpack.c.l.s4 1983009808
    %v769 = vunpack.c.0.s8 %v768
    %v770 = vlaneseq
    %v771 = vshrl.u32 %v770, 7
    %v772 = vsub.s32 %v769, %v771
    %v773 = vrot.slane %v766, %v772
    %v774 = vcombine.low %v678, %v685
    %v776 = vunpack.c.l.s4 1983009808
    %v777 = vunpack.c.0.s8 %v776
    %v778 = vlaneseq
    %v779 = vshrl.u32 %v778, 7
    %v780 = vsub.s32 %v777, %v779
    %v781 = vrot.slane %v774, %v780
    %v782 = vcombine.low %v688, %v689
    %v784 = vunpack.c.l.s4 1983009808
    %v785 = vunpack.c.0.s8 %v784
    %v786 = vlaneseq
    %v787 = vshrl.u32 %v786, 7
    %v788 = vsub.s32 %v785, %v787
    %v789 = vrot.slane %v782, %v788
    %v790 = vcombine.low %v765, %v773
    %v791 = vcombine.high %v765, %v773
    %v793 = vunpack.c.l.s4 1934713408
    %v794 = vunpack.c.0.s8 %v793
    %v795 = vlaneseq
    %v796 = vshrl.u32 %v795, 7
    %v797 = vsub.s32 %v794, %v796
    %v798 = vrot.slane %v790, %v797
    %v800 = vunpack.c.l.s4 1934713408
    %v801 = vunpack.c.0.s8 %v800
    %v802 = vlaneseq
    %v803 = vshrl.u32 %v802, 7
    %v804 = vsub.s32 %v801, %v803
    %v805 = vrot.slane %v791, %v804
    %v806 = vcombine.low %v781, %v789
    %v807 = vcombine.high %v781, %v789
    %v809 = vunpack.c.l.s4 1934713408
    %v810 = vunpack.c.0.s8 %v809
    %v811 = vlaneseq
    %v812 = vshrl.u32 %v811, 7
    %v813 = vsub.s32 %v810, %v812
    %v814 = vrot.slane %v806, %v813
    %v816 = vunpack.c.l.s4 1934713408
    %v817 = vunpack.c.0.s8 %v816
    %v818 = vlaneseq
    %v819 = vshrl.u32 %v818, 7
    %v820 = vsub.s32 %v817, %v819
    %v821 = vrot.slane %v807, %v820
    %v822 = vcombine.low %v798, %v814
    %v823 = vcombine.high %v798, %v814
    %v824 = vcombine.low %v805, %v821
    %v825 = vcombine.high %v805, %v821
    %826 = vrot.lane.b32.xlu0 %v230, 64
    %v827 = vpop.permute.xlu0 %826
    %828 = vrot.lane.b32.xlu0 %v235, 64
    %v829 = vpop.permute.xlu0 %828
    %830 = vrot.lane.b32.xlu0 %v241, 64
    %v831 = vpop.permute.xlu0 %830
    %832 = vrot.lane.b32.xlu0 %v243, 64
    %v833 = vpop.permute.xlu0 %832
    %834 = vrot.lane.b32.xlu0 %v247, 64
    %v835 = vpop.permute.xlu0 %834
    %836 = vrot.lane.b32.xlu0 %v249, 64
    %v837 = vpop.permute.xlu0 %836
    %838 = vrot.lane.b32.xlu0 %v253, 64
    %v839 = vpop.permute.xlu0 %838
    %840 = vrot.lane.b32.xlu0 %v255, 64
    %v841 = vpop.permute.xlu0 %840
    %v850 = vcombine.low %v827, %v835
    %v851 = vcombine.high %v827, %v835
    %v853 = vunpack.c.l.s4 1983009808
    %v854 = vunpack.c.0.s8 %v853
    %v855 = vlaneseq
    %v856 = vshrl.u32 %v855, 7
    %v857 = vsub.s32 %v854, %v856
    %v858 = vrot.slane %v850, %v857
    %v860 = vunpack.c.l.s4 1983009808
    %v861 = vunpack.c.0.s8 %v860
    %v862 = vlaneseq
    %v863 = vshrl.u32 %v862, 7
    %v864 = vsub.s32 %v861, %v863
    %v865 = vrot.slane %v851, %v864
    %v866 = vcombine.low %v831, %v839
    %v867 = vcombine.high %v831, %v839
    %v869 = vunpack.c.l.s4 1983009808
    %v870 = vunpack.c.0.s8 %v869
    %v871 = vlaneseq
    %v872 = vshrl.u32 %v871, 7
    %v873 = vsub.s32 %v870, %v872
    %v874 = vrot.slane %v866, %v873
    %v876 = vunpack.c.l.s4 1983009808
    %v877 = vunpack.c.0.s8 %v876
    %v878 = vlaneseq
    %v879 = vshrl.u32 %v878, 7
    %v880 = vsub.s32 %v877, %v879
    %v881 = vrot.slane %v867, %v880
    %v882 = vcombine.low %v858, %v874
    %v883 = vcombine.high %v858, %v874
    %v885 = vunpack.c.l.s4 1934713408
    %v886 = vunpack.c.0.s8 %v885
    %v887 = vlaneseq
    %v888 = vshrl.u32 %v887, 7
    %v889 = vsub.s32 %v886, %v888
    %v890 = vrot.slane %v882, %v889
    %v892 = vunpack.c.l.s4 1934713408
    %v893 = vunpack.c.0.s8 %v892
    %v894 = vlaneseq
    %v895 = vshrl.u32 %v894, 7
    %v896 = vsub.s32 %v893, %v895
    %v897 = vrot.slane %v883, %v896
    %v898 = vcombine.low %v865, %v881
    %v899 = vcombine.high %v865, %v881
    %v901 = vunpack.c.l.s4 1934713408
    %v902 = vunpack.c.0.s8 %v901
    %v903 = vlaneseq
    %v904 = vshrl.u32 %v903, 7
    %v905 = vsub.s32 %v902, %v904
    %v906 = vrot.slane %v898, %v905
    %v908 = vunpack.c.l.s4 1934713408
    %v909 = vunpack.c.0.s8 %v908
    %v910 = vlaneseq
    %v911 = vshrl.u32 %v910, 7
    %v912 = vsub.s32 %v909, %v911
    %v913 = vrot.slane %v899, %v912
    %v914 = vcombine.high %v890, 0.0
    %v915 = vcombine.high %v897, 0.0
    %v916 = vcombine.high %v906, 0.0
    %v917 = vcombine.high %v913, 0.0
    %v918 = vcombine.low %v829, %v837
    %v919 = vcombine.high %v829, %v837
    %v921 = vunpack.c.l.s4 1983009808
    %v922 = vunpack.c.0.s8 %v921
    %v923 = vlaneseq
    %v924 = vshrl.u32 %v923, 7
    %v925 = vsub.s32 %v922, %v924
    %v926 = vrot.slane %v918, %v925
    %v928 = vunpack.c.l.s4 1983009808
    %v929 = vunpack.c.0.s8 %v928
    %v930 = vlaneseq
    %v931 = vshrl.u32 %v930, 7
    %v932 = vsub.s32 %v929, %v931
    %v933 = vrot.slane %v919, %v932
    %v934 = vcombine.low %v833, %v841
    %v935 = vcombine.high %v833, %v841
    %v937 = vunpack.c.l.s4 1983009808
    %v938 = vunpack.c.0.s8 %v937
    %v939 = vlaneseq
    %v940 = vshrl.u32 %v939, 7
    %v941 = vsub.s32 %v938, %v940
    %v942 = vrot.slane %v934, %v941
    %v944 = vunpack.c.l.s4 1983009808
    %v945 = vunpack.c.0.s8 %v944
    %v946 = vlaneseq
    %v947 = vshrl.u32 %v946, 7
    %v948 = vsub.s32 %v945, %v947
    %v949 = vrot.slane %v935, %v948
    %v950 = vcombine.low %v926, %v942
    %v951 = vcombine.high %v926, %v942
    %v953 = vunpack.c.l.s4 1934713408
    %v954 = vunpack.c.0.s8 %v953
    %v955 = vlaneseq
    %v956 = vshrl.u32 %v955, 7
    %v957 = vsub.s32 %v954, %v956
    %v958 = vrot.slane %v950, %v957
    %v960 = vunpack.c.l.s4 1934713408
    %v961 = vunpack.c.0.s8 %v960
    %v962 = vlaneseq
    %v963 = vshrl.u32 %v962, 7
    %v964 = vsub.s32 %v961, %v963
    %v965 = vrot.slane %v951, %v964
    %v966 = vcombine.low %v933, %v949
    %v967 = vcombine.high %v933, %v949
    %v969 = vunpack.c.l.s4 1934713408
    %v970 = vunpack.c.0.s8 %v969
    %v971 = vlaneseq
    %v972 = vshrl.u32 %v971, 7
    %v973 = vsub.s32 %v970, %v972
    %v974 = vrot.slane %v966, %v973
    %v976 = vunpack.c.l.s4 1934713408
    %v977 = vunpack.c.0.s8 %v976
    %v978 = vlaneseq
    %v979 = vshrl.u32 %v978, 7
    %v980 = vsub.s32 %v977, %v979
    %v981 = vrot.slane %v967, %v980
    %v982 = vcombine.high %v958, 0.0
    %v983 = vcombine.high %v965, 0.0
    %v984 = vcombine.high %v974, 0.0
    %v985 = vcombine.high %v981, 0.0
    %v986 = vcombine.low %v890, %v897
    %v988 = vunpack.c.l.s4 1983009808
    %v989 = vunpack.c.0.s8 %v988
    %v990 = vlaneseq
    %v991 = vshrl.u32 %v990, 7
    %v992 = vsub.s32 %v989, %v991
    %v993 = vrot.slane %v986, %v992
    %v994 = vcombine.low %v914, %v915
    %v996 = vunpack.c.l.s4 1983009808
    %v997 = vunpack.c.0.s8 %v996
    %v998 = vlaneseq
    %v999 = vshrl.u32 %v998, 7
    %v1000 = vsub.s32 %v997, %v999
    %v1001 = vrot.slane %v994, %v1000
    %v1002 = vcombine.low %v906, %v913
    %v1004 = vunpack.c.l.s4 1983009808
    %v1005 = vunpack.c.0.s8 %v1004
    %v1006 = vlaneseq
    %v1007 = vshrl.u32 %v1006, 7
    %v1008 = vsub.s32 %v1005, %v1007
    %v1009 = vrot.slane %v1002, %v1008
    %v1010 = vcombine.low %v916, %v917
    %v1012 = vunpack.c.l.s4 1983009808
    %v1013 = vunpack.c.0.s8 %v1012
    %v1014 = vlaneseq
    %v1015 = vshrl.u32 %v1014, 7
    %v1016 = vsub.s32 %v1013, %v1015
    %v1017 = vrot.slane %v1010, %v1016
    %v1018 = vcombine.low %v993, %v1001
    %v1019 = vcombine.high %v993, %v1001
    %v1021 = vunpack.c.l.s4 1934713408
    %v1022 = vunpack.c.0.s8 %v1021
    %v1023 = vlaneseq
    %v1024 = vshrl.u32 %v1023, 7
    %v1025 = vsub.s32 %v1022, %v1024
    %v1026 = vrot.slane %v1018, %v1025
    %v1028 = vunpack.c.l.s4 1934713408
    %v1029 = vunpack.c.0.s8 %v1028
    %v1030 = vlaneseq
    %v1031 = vshrl.u32 %v1030, 7
    %v1032 = vsub.s32 %v1029, %v1031
    %v1033 = vrot.slane %v1019, %v1032
    %v1034 = vcombine.low %v1009, %v1017
    %v1035 = vcombine.high %v1009, %v1017
    %v1037 = vunpack.c.l.s4 1934713408
    %v1038 = vunpack.c.0.s8 %v1037
    %v1039 = vlaneseq
    %v1040 = vshrl.u32 %v1039, 7
    %v1041 = vsub.s32 %v1038, %v1040
    %v1042 = vrot.slane %v1034, %v1041
    %v1044 = vunpack.c.l.s4 1934713408
    %v1045 = vunpack.c.0.s8 %v1044
    %v1046 = vlaneseq
    %v1047 = vshrl.u32 %v1046, 7
    %v1048 = vsub.s32 %v1045, %v1047
    %v1049 = vrot.slane %v1035, %v1048
    %v1050 = vcombine.low %v1026, %v1042
    %v1051 = vcombine.high %v1026, %v1042
    %v1052 = vcombine.low %v1033, %v1049
    %v1053 = vcombine.high %v1033, %v1049
    %v1054 = vcombine.low %v958, %v965
    %v1056 = vunpack.c.l.s4 1983009808
    %v1057 = vunpack.c.0.s8 %v1056
    %v1058 = vlaneseq
    %v1059 = vshrl.u32 %v1058, 7
    %v1060 = vsub.s32 %v1057, %v1059
    %v1061 = vrot.slane %v1054, %v1060
    %v1062 = vcombine.low %v982, %v983
    %v1064 = vunpack.c.l.s4 1983009808
    %v1065 = vunpack.c.0.s8 %v1064
    %v1066 = vlaneseq
    %v1067 = vshrl.u32 %v1066, 7
    %v1068 = vsub.s32 %v1065, %v1067
    %v1069 = vrot.slane %v1062, %v1068
    %v1070 = vcombine.low %v974, %v981
    %v1072 = vunpack.c.l.s4 1983009808
    %v1073 = vunpack.c.0.s8 %v1072
    %v1074 = vlaneseq
    %v1075 = vshrl.u32 %v1074, 7
    %v1076 = vsub.s32 %v1073, %v1075
    %v1077 = vrot.slane %v1070, %v1076
    %v1078 = vcombine.low %v984, %v985
    %v1080 = vunpack.c.l.s4 1983009808
    %v1081 = vunpack.c.0.s8 %v1080
    %v1082 = vlaneseq
    %v1083 = vshrl.u32 %v1082, 7
    %v1084 = vsub.s32 %v1081, %v1083
    %v1085 = vrot.slane %v1078, %v1084
    %v1086 = vcombine.low %v1061, %v1069
    %v1087 = vcombine.high %v1061, %v1069
    %v1089 = vunpack.c.l.s4 1934713408
    %v1090 = vunpack.c.0.s8 %v1089
    %v1091 = vlaneseq
    %v1092 = vshrl.u32 %v1091, 7
    %v1093 = vsub.s32 %v1090, %v1092
    %v1094 = vrot.slane %v1086, %v1093
    %v1096 = vunpack.c.l.s4 1934713408
    %v1097 = vunpack.c.0.s8 %v1096
    %v1098 = vlaneseq
    %v1099 = vshrl.u32 %v1098, 7
    %v1100 = vsub.s32 %v1097, %v1099
    %v1101 = vrot.slane %v1087, %v1100
    %v1102 = vcombine.low %v1077, %v1085
    %v1103 = vcombine.high %v1077, %v1085
    %v1105 = vunpack.c.l.s4 1934713408
    %v1106 = vunpack.c.0.s8 %v1105
    %v1107 = vlaneseq
    %v1108 = vshrl.u32 %v1107, 7
    %v1109 = vsub.s32 %v1106, %v1108
    %v1110 = vrot.slane %v1102, %v1109
    %v1112 = vunpack.c.l.s4 1934713408
    %v1113 = vunpack.c.0.s8 %v1112
    %v1114 = vlaneseq
    %v1115 = vshrl.u32 %v1114, 7
    %v1116 = vsub.s32 %v1113, %v1115
    %v1117 = vrot.slane %v1103, %v1116
    %v1118 = vcombine.low %v1094, %v1110
    %v1119 = vcombine.high %v1094, %v1110
    %v1120 = vcombine.low %v1101, %v1117
    %v1121 = vcombine.high %v1101, %v1117
    %vm1122 = vcmask 64512
    %v1124 = vsel %vm1122, %v458, 0
    %v1127 = vsel %vm1122, %v754, 0
    %1129 = vmatprep.subr.mxu0 0.0
    %1130 = vmatpush1.xpose.msra.mxu0 0.0
    %1131 = vmatprep.subr.mxu0 0.0
    %1132 = vmatpush1.xpose.msra.mxu0 0.0
    %1133 = vmatprep.subr.mxu0 0.0
    %1134 = vmatpush1.xpose.msra.mxu0 0.0
    %1135 = vmatprep.subr.mxu0 0.0
    %1136 = vmatpush1.xpose.msra.mxu0 0.0
    %1137 = vmatprep.subr.mxu0 0.0
    %1138 = vmatpush1.xpose.msra.mxu0 0.0
    %1139 = vmatprep.subr.mxu0 0.0
    %1140 = vmatpush1.xpose.msra.mxu0 0.0
    %1141 = vmatprep.subr.mxu0 0.0
    %1142 = vmatpush1.xpose.msra.mxu0 0.0
    %1143 = vmatprep.subr.mxu0 0.0
    %1144 = vmatpush1.xpose.msra.mxu0 0.0
    %1145 = vmatprep.subr.mxu0 0.0
    %1146 = vmatpush1.xpose.msra.mxu0 0.0
    %1147 = vmatprep.subr.mxu0 0.0
    %1148 = vmatpush1.xpose.msra.mxu0 0.0
    %1149 = vmatprep.subr.mxu0 0.0
    %1150 = vmatpush1.xpose.msra.mxu0 0.0
    %1151 = vmatprep.subr.mxu0 0.0
    %1152 = vmatpush1.xpose.msra.mxu0 0.0
    %1153 = vmatprep.subr.mxu0 0.0
    %1154 = vmatpush1.xpose.msra.mxu0 0.0
    %1155 = vmatprep.subr.mxu0 0.0
    %1156 = vmatpush1.xpose.msra.mxu0 0.0
    %1157 = vmatprep.subr.mxu0 0.0
    %1158 = vmatpush1.xpose.msra.mxu0 0.0
    %1159 = vmatprep.subr.mxu0 0.0
    %1160 = vmatpush1.xpose.msra.mxu0 %v1127
    %1161 = vmatprep.subr.mxu0 0.0
    %1162 = vmatpush2.xpose.msra.mxu0 0.0
    %1163 = vmatprep.subr.mxu0 0.0
    %1164 = vmatpush2.xpose.msra.mxu0 0.0
    %1165 = vmatprep.subr.mxu0 0.0
    %1166 = vmatpush2.xpose.msra.mxu0 0.0
    %1167 = vmatprep.subr.mxu0 0.0
    %1168 = vmatpush2.xpose.msra.mxu0 0.0
    %1169 = vmatprep.subr.mxu0 0.0
    %1170 = vmatpush2.xpose.msra.mxu0 0.0
    %1171 = vmatprep.subr.mxu0 0.0
    %1172 = vmatpush2.xpose.msra.mxu0 0.0
    %1173 = vmatprep.subr.mxu0 0.0
    %1174 = vmatpush2.xpose.msra.mxu0 0.0
    %1175 = vmatprep.subr.mxu0 0.0
    %1176 = vmatpush2.xpose.msra.mxu0 0.0
    %1177 = vmatprep.subr.mxu0 0.0
    %1178 = vmatpush2.xpose.msra.mxu0 0.0
    %1179 = vmatprep.subr.mxu0 0.0
    %1180 = vmatpush2.xpose.msra.mxu0 0.0
    %1181 = vmatprep.subr.mxu0 0.0
    %1182 = vmatpush2.xpose.msra.mxu0 0.0
    %1183 = vmatprep.subr.mxu0 0.0
    %1184 = vmatpush2.xpose.msra.mxu0 0.0
    %1185 = vmatprep.subr.mxu0 0.0
    %1186 = vmatpush2.xpose.msra.mxu0 0.0
    %1187 = vmatprep.subr.mxu0 0.0
    %1188 = vmatpush2.xpose.msra.mxu0 0.0
    %1189 = vmatprep.subr.mxu0 0.0
    %1190 = vmatpush2.xpose.msra.mxu0 0.0
    %1191 = vmatprep.subr.mxu0 0.0
    %1192 = vmatpush2.xpose.msra.mxu0 0.0
    %1193 = vmatprep.mubr.f32.mxu0 0.0
    %1194 = vmatmul.mubr.f32.gmra.mxu0 %v1124
    %v1195 = vpop.f32.mrf.mxu0
    %v1196 = vadd.f32 0.0, %v1195
    %v1197 = vpop.f32.mrf.mxu0
    %1198 = vdwg.mxu0
    %v1200 = vsel %vm1122, %v459, 0
    %v1203 = vsel %vm1122, %v755, 0
    %1205 = vmatprep.subr.mxu0 0.0
    %1206 = vmatpush1.xpose.msra.mxu0 0.0
    %1207 = vmatprep.subr.mxu0 0.0
    %1208 = vmatpush1.xpose.msra.mxu0 0.0
    %1209 = vmatprep.subr.mxu0 0.0
    %1210 = vmatpush1.xpose.msra.mxu0 0.0
    %1211 = vmatprep.subr.mxu0 0.0
    %1212 = vmatpush1.xpose.msra.mxu0 0.0
    %1213 = vmatprep.subr.mxu0 0.0
    %1214 = vmatpush1.xpose.msra.mxu0 0.0
    %1215 = vmatprep.subr.mxu0 0.0
    %1216 = vmatpush1.xpose.msra.mxu0 0.0
    %1217 = vmatprep.subr.mxu0 0.0
    %1218 = vmatpush1.xpose.msra.mxu0 0.0
    %1219 = vmatprep.subr.mxu0 0.0
    %1220 = vmatpush1.xpose.msra.mxu0 0.0
    %1221 = vmatprep.subr.mxu0 0.0
    %1222 = vmatpush1.xpose.msra.mxu0 0.0
    %1223 = vmatprep.subr.mxu0 0.0
    %1224 = vmatpush1.xpose.msra.mxu0 0.0
    %1225 = vmatprep.subr.mxu0 0.0
    %1226 = vmatpush1.xpose.msra.mxu0 0.0
    %1227 = vmatprep.subr.mxu0 0.0
    %1228 = vmatpush1.xpose.msra.mxu0 0.0
    %1229 = vmatprep.subr.mxu0 0.0
    %1230 = vmatpush1.xpose.msra.mxu0 0.0
    %1231 = vmatprep.subr.mxu0 0.0
    %1232 = vmatpush1.xpose.msra.mxu0 0.0
    %1233 = vmatprep.subr.mxu0 0.0
    %1234 = vmatpush1.xpose.msra.mxu0 0.0
    %1235 = vmatprep.subr.mxu0 0.0
    %1236 = vmatpush1.xpose.msra.mxu0 %v1203
    %1237 = vmatprep.subr.mxu0 0.0
    %1238 = vmatpush2.xpose.msra.mxu0 0.0
    %1239 = vmatprep.subr.mxu0 0.0
    %1240 = vmatpush2.xpose.msra.mxu0 0.0
    %1241 = vmatprep.subr.mxu0 0.0
    %1242 = vmatpush2.xpose.msra.mxu0 0.0
    %1243 = vmatprep.subr.mxu0 0.0
    %1244 = vmatpush2.xpose.msra.mxu0 0.0
    %1245 = vmatprep.subr.mxu0 0.0
    %1246 = vmatpush2.xpose.msra.mxu0 0.0
    %1247 = vmatprep.subr.mxu0 0.0
    %1248 = vmatpush2.xpose.msra.mxu0 0.0
    %1249 = vmatprep.subr.mxu0 0.0
    %1250 = vmatpush2.xpose.msra.mxu0 0.0
    %1251 = vmatprep.subr.mxu0 0.0
    %1252 = vmatpush2.xpose.msra.mxu0 0.0
    %1253 = vmatprep.subr.mxu0 0.0
    %1254 = vmatpush2.xpose.msra.mxu0 0.0
    %1255 = vmatprep.subr.mxu0 0.0
    %1256 = vmatpush2.xpose.msra.mxu0 0.0
    %1257 = vmatprep.subr.mxu0 0.0
    %1258 = vmatpush2.xpose.msra.mxu0 0.0
    %1259 = vmatprep.subr.mxu0 0.0
    %1260 = vmatpush2.xpose.msra.mxu0 0.0
    %1261 = vmatprep.subr.mxu0 0.0
    %1262 = vmatpush2.xpose.msra.mxu0 0.0
    %1263 = vmatprep.subr.mxu0 0.0
    %1264 = vmatpush2.xpose.msra.mxu0 0.0
    %1265 = vmatprep.subr.mxu0 0.0
    %1266 = vmatpush2.xpose.msra.mxu0 0.0
    %1267 = vmatprep.subr.mxu0 0.0
    %1268 = vmatpush2.xpose.msra.mxu0 0.0
    %1269 = vmatprep.mubr.f32.mxu0 0.0
    %1270 = vmatmul.mubr.f32.gmra.mxu0 %v1200
    %v1271 = vpop.f32.mrf.mxu0
    %v1272 = vadd.f32 0.0, %v1271
    %v1273 = vpop.f32.mrf.mxu0
    %1274 = vdwg.mxu0
    %v1276 = vsel %vm1122, %v460, 0
    %v1279 = vsel %vm1122, %v756, 0
    %1281 = vmatprep.subr.mxu0 0.0
    %1282 = vmatpush1.xpose.msra.mxu0 0.0
    %1283 = vmatprep.subr.mxu0 0.0
    %1284 = vmatpush1.xpose.msra.mxu0 0.0
    %1285 = vmatprep.subr.mxu0 0.0
    %1286 = vmatpush1.xpose.msra.mxu0 0.0
    %1287 = vmatprep.subr.mxu0 0.0
    %1288 = vmatpush1.xpose.msra.mxu0 0.0
    %1289 = vmatprep.subr.mxu0 0.0
    %1290 = vmatpush1.xpose.msra.mxu0 0.0
    %1291 = vmatprep.subr.mxu0 0.0
    %1292 = vmatpush1.xpose.msra.mxu0 0.0
    %1293 = vmatprep.subr.mxu0 0.0
    %1294 = vmatpush1.xpose.msra.mxu0 0.0
    %1295 = vmatprep.subr.mxu0 0.0
    %1296 = vmatpush1.xpose.msra.mxu0 0.0
    %1297 = vmatprep.subr.mxu0 0.0
    %1298 = vmatpush1.xpose.msra.mxu0 0.0
    %1299 = vmatprep.subr.mxu0 0.0
    %1300 = vmatpush1.xpose.msra.mxu0 0.0
    %1301 = vmatprep.subr.mxu0 0.0
    %1302 = vmatpush1.xpose.msra.mxu0 0.0
    %1303 = vmatprep.subr.mxu0 0.0
    %1304 = vmatpush1.xpose.msra.mxu0 0.0
    %1305 = vmatprep.subr.mxu0 0.0
    %1306 = vmatpush1.xpose.msra.mxu0 0.0
    %1307 = vmatprep.subr.mxu0 0.0
    %1308 = vmatpush1.xpose.msra.mxu0 0.0
    %1309 = vmatprep.subr.mxu0 0.0
    %1310 = vmatpush1.xpose.msra.mxu0 0.0
    %1311 = vmatprep.subr.mxu0 0.0
    %1312 = vmatpush1.xpose.msra.mxu0 %v1279
    %1313 = vmatprep.subr.mxu0 0.0
    %1314 = vmatpush2.xpose.msra.mxu0 0.0
    %1315 = vmatprep.subr.mxu0 0.0
    %1316 = vmatpush2.xpose.msra.mxu0 0.0
    %1317 = vmatprep.subr.mxu0 0.0
    %1318 = vmatpush2.xpose.msra.mxu0 0.0
    %1319 = vmatprep.subr.mxu0 0.0
    %1320 = vmatpush2.xpose.msra.mxu0 0.0
    %1321 = vmatprep.subr.mxu0 0.0
    %1322 = vmatpush2.xpose.msra.mxu0 0.0
    %1323 = vmatprep.subr.mxu0 0.0
    %1324 = vmatpush2.xpose.msra.mxu0 0.0
    %1325 = vmatprep.subr.mxu0 0.0
    %1326 = vmatpush2.xpose.msra.mxu0 0.0
    %1327 = vmatprep.subr.mxu0 0.0
    %1328 = vmatpush2.xpose.msra.mxu0 0.0
    %1329 = vmatprep.subr.mxu0 0.0
    %1330 = vmatpush2.xpose.msra.mxu0 0.0
    %1331 = vmatprep.subr.mxu0 0.0
    %1332 = vmatpush2.xpose.msra.mxu0 0.0
    %1333 = vmatprep.subr.mxu0 0.0
    %1334 = vmatpush2.xpose.msra.mxu0 0.0
    %1335 = vmatprep.subr.mxu0 0.0
    %1336 = vmatpush2.xpose.msra.mxu0 0.0
    %1337 = vmatprep.subr.mxu0 0.0
    %1338 = vmatpush2.xpose.msra.mxu0 0.0
    %1339 = vmatprep.subr.mxu0 0.0
    %1340 = vmatpush2.xpose.msra.mxu0 0.0
    %1341 = vmatprep.subr.mxu0 0.0
    %1342 = vmatpush2.xpose.msra.mxu0 0.0
    %1343 = vmatprep.subr.mxu0 0.0
    %1344 = vmatpush2.xpose.msra.mxu0 0.0
    %1345 = vmatprep.mubr.f32.mxu0 0.0
    %1346 = vmatmul.mubr.f32.gmra.mxu0 %v1276
    %v1347 = vpop.f32.mrf.mxu0
    %v1348 = vadd.f32 0.0, %v1347
    %v1349 = vpop.f32.mrf.mxu0
    %1350 = vdwg.mxu0
    %v1352 = vsel %vm1122, %v461, 0
    %v1355 = vsel %vm1122, %v757, 0
    %1357 = vmatprep.subr.mxu0 0.0
    %1358 = vmatpush1.xpose.msra.mxu0 0.0
    %1359 = vmatprep.subr.mxu0 0.0
    %1360 = vmatpush1.xpose.msra.mxu0 0.0
    %1361 = vmatprep.subr.mxu0 0.0
    %1362 = vmatpush1.xpose.msra.mxu0 0.0
    %1363 = vmatprep.subr.mxu0 0.0
    %1364 = vmatpush1.xpose.msra.mxu0 0.0
    %1365 = vmatprep.subr.mxu0 0.0
    %1366 = vmatpush1.xpose.msra.mxu0 0.0
    %1367 = vmatprep.subr.mxu0 0.0
    %1368 = vmatpush1.xpose.msra.mxu0 0.0
    %1369 = vmatprep.subr.mxu0 0.0
    %1370 = vmatpush1.xpose.msra.mxu0 0.0
    %1371 = vmatprep.subr.mxu0 0.0
    %1372 = vmatpush1.xpose.msra.mxu0 0.0
    %1373 = vmatprep.subr.mxu0 0.0
    %1374 = vmatpush1.xpose.msra.mxu0 0.0
    %1375 = vmatprep.subr.mxu0 0.0
    %1376 = vmatpush1.xpose.msra.mxu0 0.0
    %1377 = vmatprep.subr.mxu0 0.0
    %1378 = vmatpush1.xpose.msra.mxu0 0.0
    %1379 = vmatprep.subr.mxu0 0.0
    %1380 = vmatpush1.xpose.msra.mxu0 0.0
    %1381 = vmatprep.subr.mxu0 0.0
    %1382 = vmatpush1.xpose.msra.mxu0 0.0
    %1383 = vmatprep.subr.mxu0 0.0
    %1384 = vmatpush1.xpose.msra.mxu0 0.0
    %1385 = vmatprep.subr.mxu0 0.0
    %1386 = vmatpush1.xpose.msra.mxu0 0.0
    %1387 = vmatprep.subr.mxu0 0.0
    %1388 = vmatpush1.xpose.msra.mxu0 %v1355
    %1389 = vmatprep.subr.mxu0 0.0
    %1390 = vmatpush2.xpose.msra.mxu0 0.0
    %1391 = vmatprep.subr.mxu0 0.0
    %1392 = vmatpush2.xpose.msra.mxu0 0.0
    %1393 = vmatprep.subr.mxu0 0.0
    %1394 = vmatpush2.xpose.msra.mxu0 0.0
    %1395 = vmatprep.subr.mxu0 0.0
    %1396 = vmatpush2.xpose.msra.mxu0 0.0
    %1397 = vmatprep.subr.mxu0 0.0
    %1398 = vmatpush2.xpose.msra.mxu0 0.0
    %1399 = vmatprep.subr.mxu0 0.0
    %1400 = vmatpush2.xpose.msra.mxu0 0.0
    %1401 = vmatprep.subr.mxu0 0.0
    %1402 = vmatpush2.xpose.msra.mxu0 0.0
    %1403 = vmatprep.subr.mxu0 0.0
    %1404 = vmatpush2.xpose.msra.mxu0 0.0
    %1405 = vmatprep.subr.mxu0 0.0
    %1406 = vmatpush2.xpose.msra.mxu0 0.0
    %1407 = vmatprep.subr.mxu0 0.0
    %1408 = vmatpush2.xpose.msra.mxu0 0.0
    %1409 = vmatprep.subr.mxu0 0.0
    %1410 = vmatpush2.xpose.msra.mxu0 0.0
    %1411 = vmatprep.subr.mxu0 0.0
    %1412 = vmatpush2.xpose.msra.mxu0 0.0
    %1413 = vmatprep.subr.mxu0 0.0
    %1414 = vmatpush2.xpose.msra.mxu0 0.0
    %1415 = vmatprep.subr.mxu0 0.0
    %1416 = vmatpush2.xpose.msra.mxu0 0.0
    %1417 = vmatprep.subr.mxu0 0.0
    %1418 = vmatpush2.xpose.msra.mxu0 0.0
    %1419 = vmatprep.subr.mxu0 0.0
    %1420 = vmatpush2.xpose.msra.mxu0 0.0
    %1421 = vmatprep.mubr.f32.mxu0 0.0
    %1422 = vmatmul.mubr.f32.gmra.mxu0 %v1352
    %v1423 = vpop.f32.mrf.mxu0
    %v1424 = vadd.f32 0.0, %v1423
    %v1425 = vpop.f32.mrf.mxu0
    %1426 = vdwg.mxu0
    %v1428 = vsel %vm1122, %v526, 0
    %v1431 = vsel %vm1122, %v822, 0
    %1433 = vmatprep.subr.mxu0 0.0
    %1434 = vmatpush1.xpose.msra.mxu0 0.0
    %1435 = vmatprep.subr.mxu0 0.0
    %1436 = vmatpush1.xpose.msra.mxu0 0.0
    %1437 = vmatprep.subr.mxu0 0.0
    %1438 = vmatpush1.xpose.msra.mxu0 0.0
    %1439 = vmatprep.subr.mxu0 0.0
    %1440 = vmatpush1.xpose.msra.mxu0 0.0
    %1441 = vmatprep.subr.mxu0 0.0
    %1442 = vmatpush1.xpose.msra.mxu0 0.0
    %1443 = vmatprep.subr.mxu0 0.0
    %1444 = vmatpush1.xpose.msra.mxu0 0.0
    %1445 = vmatprep.subr.mxu0 0.0
    %1446 = vmatpush1.xpose.msra.mxu0 0.0
    %1447 = vmatprep.subr.mxu0 0.0
    %1448 = vmatpush1.xpose.msra.mxu0 0.0
    %1449 = vmatprep.subr.mxu0 0.0
    %1450 = vmatpush1.xpose.msra.mxu0 0.0
    %1451 = vmatprep.subr.mxu0 0.0
    %1452 = vmatpush1.xpose.msra.mxu0 0.0
    %1453 = vmatprep.subr.mxu0 0.0
    %1454 = vmatpush1.xpose.msra.mxu0 0.0
    %1455 = vmatprep.subr.mxu0 0.0
    %1456 = vmatpush1.xpose.msra.mxu0 0.0
    %1457 = vmatprep.subr.mxu0 0.0
    %1458 = vmatpush1.xpose.msra.mxu0 0.0
    %1459 = vmatprep.subr.mxu0 0.0
    %1460 = vmatpush1.xpose.msra.mxu0 0.0
    %1461 = vmatprep.subr.mxu0 0.0
    %1462 = vmatpush1.xpose.msra.mxu0 0.0
    %1463 = vmatprep.subr.mxu0 0.0
    %1464 = vmatpush1.xpose.msra.mxu0 %v1431
    %1465 = vmatprep.subr.mxu0 0.0
    %1466 = vmatpush2.xpose.msra.mxu0 0.0
    %1467 = vmatprep.subr.mxu0 0.0
    %1468 = vmatpush2.xpose.msra.mxu0 0.0
    %1469 = vmatprep.subr.mxu0 0.0
    %1470 = vmatpush2.xpose.msra.mxu0 0.0
    %1471 = vmatprep.subr.mxu0 0.0
    %1472 = vmatpush2.xpose.msra.mxu0 0.0
    %1473 = vmatprep.subr.mxu0 0.0
    %1474 = vmatpush2.xpose.msra.mxu0 0.0
    %1475 = vmatprep.subr.mxu0 0.0
    %1476 = vmatpush2.xpose.msra.mxu0 0.0
    %1477 = vmatprep.subr.mxu0 0.0
    %1478 = vmatpush2.xpose.msra.mxu0 0.0
    %1479 = vmatprep.subr.mxu0 0.0
    %1480 = vmatpush2.xpose.msra.mxu0 0.0
    %1481 = vmatprep.subr.mxu0 0.0
    %1482 = vmatpush2.xpose.msra.mxu0 0.0
    %1483 = vmatprep.subr.mxu0 0.0
    %1484 = vmatpush2.xpose.msra.mxu0 0.0
    %1485 = vmatprep.subr.mxu0 0.0
    %1486 = vmatpush2.xpose.msra.mxu0 0.0
    %1487 = vmatprep.subr.mxu0 0.0
    %1488 = vmatpush2.xpose.msra.mxu0 0.0
    %1489 = vmatprep.subr.mxu0 0.0
    %1490 = vmatpush2.xpose.msra.mxu0 0.0
    %1491 = vmatprep.subr.mxu0 0.0
    %1492 = vmatpush2.xpose.msra.mxu0 0.0
    %1493 = vmatprep.subr.mxu0 0.0
    %1494 = vmatpush2.xpose.msra.mxu0 0.0
    %1495 = vmatprep.subr.mxu0 0.0
    %1496 = vmatpush2.xpose.msra.mxu0 0.0
    %1497 = vmatprep.mubr.f32.mxu0 0.0
    %1498 = vmatmul.mubr.f32.gmra.mxu0 %v1428
    %v1499 = vpop.f32.mrf.mxu0
    %v1500 = vadd.f32 0.0, %v1499
    %v1501 = vpop.f32.mrf.mxu0
    %1502 = vdwg.mxu0
    %v1504 = vsel %vm1122, %v527, 0
    %v1507 = vsel %vm1122, %v823, 0
    %1509 = vmatprep.subr.mxu0 0.0
    %1510 = vmatpush1.xpose.msra.mxu0 0.0
    %1511 = vmatprep.subr.mxu0 0.0
    %1512 = vmatpush1.xpose.msra.mxu0 0.0
    %1513 = vmatprep.subr.mxu0 0.0
    %1514 = vmatpush1.xpose.msra.mxu0 0.0
    %1515 = vmatprep.subr.mxu0 0.0
    %1516 = vmatpush1.xpose.msra.mxu0 0.0
    %1517 = vmatprep.subr.mxu0 0.0
    %1518 = vmatpush1.xpose.msra.mxu0 0.0
    %1519 = vmatprep.subr.mxu0 0.0
    %1520 = vmatpush1.xpose.msra.mxu0 0.0
    %1521 = vmatprep.subr.mxu0 0.0
    %1522 = vmatpush1.xpose.msra.mxu0 0.0
    %1523 = vmatprep.subr.mxu0 0.0
    %1524 = vmatpush1.xpose.msra.mxu0 0.0
    %1525 = vmatprep.subr.mxu0 0.0
    %1526 = vmatpush1.xpose.msra.mxu0 0.0
    %1527 = vmatprep.subr.mxu0 0.0
    %1528 = vmatpush1.xpose.msra.mxu0 0.0
    %1529 = vmatprep.subr.mxu0 0.0
    %1530 = vmatpush1.xpose.msra.mxu0 0.0
    %1531 = vmatprep.subr.mxu0 0.0
    %1532 = vmatpush1.xpose.msra.mxu0 0.0
    %1533 = vmatprep.subr.mxu0 0.0
    %1534 = vmatpush1.xpose.msra.mxu0 0.0
    %1535 = vmatprep.subr.mxu0 0.0
    %1536 = vmatpush1.xpose.msra.mxu0 0.0
    %1537 = vmatprep.subr.mxu0 0.0
    %1538 = vmatpush1.xpose.msra.mxu0 0.0
    %1539 = vmatprep.subr.mxu0 0.0
    %1540 = vmatpush1.xpose.msra.mxu0 %v1507
    %1541 = vmatprep.subr.mxu0 0.0
    %1542 = vmatpush2.xpose.msra.mxu0 0.0
    %1543 = vmatprep.subr.mxu0 0.0
    %1544 = vmatpush2.xpose.msra.mxu0 0.0
    %1545 = vmatprep.subr.mxu0 0.0
    %1546 = vmatpush2.xpose.msra.mxu0 0.0
    %1547 = vmatprep.subr.mxu0 0.0
    %1548 = vmatpush2.xpose.msra.mxu0 0.0
    %1549 = vmatprep.subr.mxu0 0.0
    %1550 = vmatpush2.xpose.msra.mxu0 0.0
    %1551 = vmatprep.subr.mxu0 0.0
    %1552 = vmatpush2.xpose.msra.mxu0 0.0
    %1553 = vmatprep.subr.mxu0 0.0
    %1554 = vmatpush2.xpose.msra.mxu0 0.0
    %1555 = vmatprep.subr.mxu0 0.0
    %1556 = vmatpush2.xpose.msra.mxu0 0.0
    %1557 = vmatprep.subr.mxu0 0.0
    %1558 = vmatpush2.xpose.msra.mxu0 0.0
    %1559 = vmatprep.subr.mxu0 0.0
    %1560 = vmatpush2.xpose.msra.mxu0 0.0
    %1561 = vmatprep.subr.mxu0 0.0
    %1562 = vmatpush2.xpose.msra.mxu0 0.0
    %1563 = vmatprep.subr.mxu0 0.0
    %1564 = vmatpush2.xpose.msra.mxu0 0.0
    %1565 = vmatprep.subr.mxu0 0.0
    %1566 = vmatpush2.xpose.msra.mxu0 0.0
    %1567 = vmatprep.subr.mxu0 0.0
    %1568 = vmatpush2.xpose.msra.mxu0 0.0
    %1569 = vmatprep.subr.mxu0 0.0
    %1570 = vmatpush2.xpose.msra.mxu0 0.0
    %1571 = vmatprep.subr.mxu0 0.0
    %1572 = vmatpush2.xpose.msra.mxu0 0.0
    %1573 = vmatprep.mubr.f32.mxu0 0.0
    %1574 = vmatmul.mubr.f32.gmra.mxu0 %v1504
    %v1575 = vpop.f32.mrf.mxu0
    %v1576 = vadd.f32 0.0, %v1575
    %v1577 = vpop.f32.mrf.mxu0
    %1578 = vdwg.mxu0
    %v1580 = vsel %vm1122, %v528, 0
    %v1583 = vsel %vm1122, %v824, 0
    %1585 = vmatprep.subr.mxu0 0.0
    %1586 = vmatpush1.xpose.msra.mxu0 0.0
    %1587 = vmatprep.subr.mxu0 0.0
    %1588 = vmatpush1.xpose.msra.mxu0 0.0
    %1589 = vmatprep.subr.mxu0 0.0
    %1590 = vmatpush1.xpose.msra.mxu0 0.0
    %1591 = vmatprep.subr.mxu0 0.0
    %1592 = vmatpush1.xpose.msra.mxu0 0.0
    %1593 = vmatprep.subr.mxu0 0.0
    %1594 = vmatpush1.xpose.msra.mxu0 0.0
    %1595 = vmatprep.subr.mxu0 0.0
    %1596 = vmatpush1.xpose.msra.mxu0 0.0
    %1597 = vmatprep.subr.mxu0 0.0
    %1598 = vmatpush1.xpose.msra.mxu0 0.0
    %1599 = vmatprep.subr.mxu0 0.0
    %1600 = vmatpush1.xpose.msra.mxu0 0.0
    %1601 = vmatprep.subr.mxu0 0.0
    %1602 = vmatpush1.xpose.msra.mxu0 0.0
    %1603 = vmatprep.subr.mxu0 0.0
    %1604 = vmatpush1.xpose.msra.mxu0 0.0
    %1605 = vmatprep.subr.mxu0 0.0
    %1606 = vmatpush1.xpose.msra.mxu0 0.0
    %1607 = vmatprep.subr.mxu0 0.0
    %1608 = vmatpush1.xpose.msra.mxu0 0.0
    %1609 = vmatprep.subr.mxu0 0.0
    %1610 = vmatpush1.xpose.msra.mxu0 0.0
    %1611 = vmatprep.subr.mxu0 0.0
    %1612 = vmatpush1.xpose.msra.mxu0 0.0
    %1613 = vmatprep.subr.mxu0 0.0
    %1614 = vmatpush1.xpose.msra.mxu0 0.0
    %1615 = vmatprep.subr.mxu0 0.0
    %1616 = vmatpush1.xpose.msra.mxu0 %v1583
    %1617 = vmatprep.subr.mxu0 0.0
    %1618 = vmatpush2.xpose.msra.mxu0 0.0
    %1619 = vmatprep.subr.mxu0 0.0
    %1620 = vmatpush2.xpose.msra.mxu0 0.0
    %1621 = vmatprep.subr.mxu0 0.0
    %1622 = vmatpush2.xpose.msra.mxu0 0.0
    %1623 = vmatprep.subr.mxu0 0.0
    %1624 = vmatpush2.xpose.msra.mxu0 0.0
    %1625 = vmatprep.subr.mxu0 0.0
    %1626 = vmatpush2.xpose.msra.mxu0 0.0
    %1627 = vmatprep.subr.mxu0 0.0
    %1628 = vmatpush2.xpose.msra.mxu0 0.0
    %1629 = vmatprep.subr.mxu0 0.0
    %1630 = vmatpush2.xpose.msra.mxu0 0.0
    %1631 = vmatprep.subr.mxu0 0.0
    %1632 = vmatpush2.xpose.msra.mxu0 0.0
    %1633 = vmatprep.subr.mxu0 0.0
    %1634 = vmatpush2.xpose.msra.mxu0 0.0
    %1635 = vmatprep.subr.mxu0 0.0
    %1636 = vmatpush2.xpose.msra.mxu0 0.0
    %1637 = vmatprep.subr.mxu0 0.0
    %1638 = vmatpush2.xpose.msra.mxu0 0.0
    %1639 = vmatprep.subr.mxu0 0.0
    %1640 = vmatpush2.xpose.msra.mxu0 0.0
    %1641 = vmatprep.subr.mxu0 0.0
    %1642 = vmatpush2.xpose.msra.mxu0 0.0
    %1643 = vmatprep.subr.mxu0 0.0
    %1644 = vmatpush2.xpose.msra.mxu0 0.0
    %1645 = vmatprep.subr.mxu0 0.0
    %1646 = vmatpush2.xpose.msra.mxu0 0.0
    %1647 = vmatprep.subr.mxu0 0.0
    %1648 = vmatpush2.xpose.msra.mxu0 0.0
    %1649 = vmatprep.mubr.f32.mxu0 0.0
    %1650 = vmatmul.mubr.f32.gmra.mxu0 %v1580
    %v1651 = vpop.f32.mrf.mxu0
    %v1652 = vadd.f32 0.0, %v1651
    %v1653 = vpop.f32.mrf.mxu0
    %1654 = vdwg.mxu0
    %v1656 = vsel %vm1122, %v529, 0
    %v1659 = vsel %vm1122, %v825, 0
    %1661 = vmatprep.subr.mxu0 0.0
    %1662 = vmatpush1.xpose.msra.mxu0 0.0
    %1663 = vmatprep.subr.mxu0 0.0
    %1664 = vmatpush1.xpose.msra.mxu0 0.0
    %1665 = vmatprep.subr.mxu0 0.0
    %1666 = vmatpush1.xpose.msra.mxu0 0.0
    %1667 = vmatprep.subr.mxu0 0.0
    %1668 = vmatpush1.xpose.msra.mxu0 0.0
    %1669 = vmatprep.subr.mxu0 0.0
    %1670 = vmatpush1.xpose.msra.mxu0 0.0
    %1671 = vmatprep.subr.mxu0 0.0
    %1672 = vmatpush1.xpose.msra.mxu0 0.0
    %1673 = vmatprep.subr.mxu0 0.0
    %1674 = vmatpush1.xpose.msra.mxu0 0.0
    %1675 = vmatprep.subr.mxu0 0.0
    %1676 = vmatpush1.xpose.msra.mxu0 0.0
    %1677 = vmatprep.subr.mxu0 0.0
    %1678 = vmatpush1.xpose.msra.mxu0 0.0
    %1679 = vmatprep.subr.mxu0 0.0
    %1680 = vmatpush1.xpose.msra.mxu0 0.0
    %1681 = vmatprep.subr.mxu0 0.0
    %1682 = vmatpush1.xpose.msra.mxu0 0.0
    %1683 = vmatprep.subr.mxu0 0.0
    %1684 = vmatpush1.xpose.msra.mxu0 0.0
    %1685 = vmatprep.subr.mxu0 0.0
    %1686 = vmatpush1.xpose.msra.mxu0 0.0
    %1687 = vmatprep.subr.mxu0 0.0
    %1688 = vmatpush1.xpose.msra.mxu0 0.0
    %1689 = vmatprep.subr.mxu0 0.0
    %1690 = vmatpush1.xpose.msra.mxu0 0.0
    %1691 = vmatprep.subr.mxu0 0.0
    %1692 = vmatpush1.xpose.msra.mxu0 %v1659
    %1693 = vmatprep.subr.mxu0 0.0
    %1694 = vmatpush2.xpose.msra.mxu0 0.0
    %1695 = vmatprep.subr.mxu0 0.0
    %1696 = vmatpush2.xpose.msra.mxu0 0.0
    %1697 = vmatprep.subr.mxu0 0.0
    %1698 = vmatpush2.xpose.msra.mxu0 0.0
    %1699 = vmatprep.subr.mxu0 0.0
    %1700 = vmatpush2.xpose.msra.mxu0 0.0
    %1701 = vmatprep.subr.mxu0 0.0
    %1702 = vmatpush2.xpose.msra.mxu0 0.0
    %1703 = vmatprep.subr.mxu0 0.0
    %1704 = vmatpush2.xpose.msra.mxu0 0.0
    %1705 = vmatprep.subr.mxu0 0.0
    %1706 = vmatpush2.xpose.msra.mxu0 0.0
    %1707 = vmatprep.subr.mxu0 0.0
    %1708 = vmatpush2.xpose.msra.mxu0 0.0
    %1709 = vmatprep.subr.mxu0 0.0
    %1710 = vmatpush2.xpose.msra.mxu0 0.0
    %1711 = vmatprep.subr.mxu0 0.0
    %1712 = vmatpush2.xpose.msra.mxu0 0.0
    %1713 = vmatprep.subr.mxu0 0.0
    %1714 = vmatpush2.xpose.msra.mxu0 0.0
    %1715 = vmatprep.subr.mxu0 0.0
    %1716 = vmatpush2.xpose.msra.mxu0 0.0
    %1717 = vmatprep.subr.mxu0 0.0
    %1718 = vmatpush2.xpose.msra.mxu0 0.0
    %1719 = vmatprep.subr.mxu0 0.0
    %1720 = vmatpush2.xpose.msra.mxu0 0.0
    %1721 = vmatprep.subr.mxu0 0.0
    %1722 = vmatpush2.xpose.msra.mxu0 0.0
    %1723 = vmatprep.subr.mxu0 0.0
    %1724 = vmatpush2.xpose.msra.mxu0 0.0
    %1725 = vmatprep.mubr.f32.mxu0 0.0
    %1726 = vmatmul.mubr.f32.gmra.mxu0 %v1656
    %v1727 = vpop.f32.mrf.mxu0
    %v1728 = vadd.f32 0.0, %v1727
    %v1729 = vpop.f32.mrf.mxu0
    %1730 = vdwg.mxu0
    %v1731 = vsel %vm84, -1e+09, %v1196
    %v1732 = vsel %vm84, -1e+09, %v1272
    %v1733 = vsel %vm84, -1e+09, %v1348
    %v1734 = vsel %vm84, -1e+09, %v1424
    %v1735 = vsel %vm85, -1e+09, %v1500
    %v1736 = vsel %vm85, -1e+09, %v1576
    %v1737 = vsel %vm85, -1e+09, %v1652
    %v1738 = vsel %vm85, -1e+09, %v1728
    %v1739 = vsel %vm1122, %v1731, -inf
    %1740 = vmax.xlane.f32.xlu0 %v1739
    %v1741 = vpop.xlane.xlu0 %1740
    %v1742 = vsel %vm1122, %v1732, -inf
    %1743 = vmax.xlane.f32.xlu0 %v1742
    %v1744 = vpop.xlane.xlu0 %1743
    %v1745 = vsel %vm1122, %v1733, -inf
    %1746 = vmax.xlane.f32.xlu0 %v1745
    %v1747 = vpop.xlane.xlu0 %1746
    %v1748 = vsel %vm1122, %v1734, -inf
    %1749 = vmax.xlane.f32.xlu0 %v1748
    %v1750 = vpop.xlane.xlu0 %1749
    %v1751 = vsel %vm1122, %v1735, -inf
    %1752 = vmax.xlane.f32.xlu0 %v1751
    %v1753 = vpop.xlane.xlu0 %1752
    %v1754 = vsel %vm1122, %v1736, -inf
    %1755 = vmax.xlane.f32.xlu0 %v1754
    %v1756 = vpop.xlane.xlu0 %1755
    %v1757 = vsel %vm1122, %v1737, -inf
    %1758 = vmax.xlane.f32.xlu0 %v1757
    %v1759 = vpop.xlane.xlu0 %1758
    %v1760 = vsel %vm1122, %v1738, -inf
    %1761 = vmax.xlane.f32.xlu0 %v1760
    %v1762 = vpop.xlane.xlu0 %1761
    %v1763 = vsub.f32 %v1731, %v1741
    %v1764 = vsub.f32 %v1732, %v1744
    %v1765 = vsub.f32 %v1733, %v1747
    %v1766 = vsub.f32 %v1734, %v1750
    %v1767 = vsub.f32 %v1735, %v1753
    %v1768 = vsub.f32 %v1736, %v1756
    %v1769 = vsub.f32 %v1737, %v1759
    %v1770 = vsub.f32 %v1738, %v1762
    %v1771 = vmul.f32 %v1763, 1.442695
    %v1772 = vpow.pop %v1771
    %v1773 = vmul.f32 %v1764, 1.442695
    %v1774 = vpow.pop %v1773
    %v1775 = vmul.f32 %v1765, 1.442695
    %v1776 = vpow.pop %v1775
    %v1777 = vmul.f32 %v1766, 1.442695
    %v1778 = vpow.pop %v1777
    %v1779 = vmul.f32 %v1767, 1.442695
    %v1780 = vpow.pop %v1779
    %v1781 = vmul.f32 %v1768, 1.442695
    %v1782 = vpow.pop %v1781
    %v1783 = vmul.f32 %v1769, 1.442695
    %v1784 = vpow.pop %v1783
    %v1785 = vmul.f32 %v1770, 1.442695
    %v1786 = vpow.pop %v1785
    %v1787 = vsel %vm1122, %v1772, 0.0
    %1788 = vadd.xlane.f32.xlu0 %v1787
    %v1789 = vpop.xlane.xlu0 %1788
    %v1790 = vsel %vm1122, %v1774, 0.0
    %1791 = vadd.xlane.f32.xlu0 %v1790
    %v1792 = vpop.xlane.xlu0 %1791
    %v1793 = vsel %vm1122, %v1776, 0.0
    %1794 = vadd.xlane.f32.xlu0 %v1793
    %v1795 = vpop.xlane.xlu0 %1794
    %v1796 = vsel %vm1122, %v1778, 0.0
    %1797 = vadd.xlane.f32.xlu0 %v1796
    %v1798 = vpop.xlane.xlu0 %1797
    %v1799 = vsel %vm1122, %v1780, 0.0
    %1800 = vadd.xlane.f32.xlu0 %v1799
    %v1801 = vpop.xlane.xlu0 %1800
    %v1802 = vsel %vm1122, %v1782, 0.0
    %1803 = vadd.xlane.f32.xlu0 %v1802
    %v1804 = vpop.xlane.xlu0 %1803
    %v1805 = vsel %vm1122, %v1784, 0.0
    %1806 = vadd.xlane.f32.xlu0 %v1805
    %v1807 = vpop.xlane.xlu0 %1806
    %v1808 = vsel %vm1122, %v1786, 0.0
    %1809 = vadd.xlane.f32.xlu0 %v1808
    %v1810 = vpop.xlane.xlu0 %1809
    %v1811 = vrcp.pop %v1789
    %v1812 = vrcp.pop %v1792
    %v1813 = vrcp.pop %v1795
    %v1814 = vrcp.pop %v1798
    %v1815 = vrcp.pop %v1801
    %v1816 = vrcp.pop %v1804
    %v1817 = vrcp.pop %v1807
    %v1818 = vrcp.pop %v1810
    %v1819 = vmul.f32 %v1772, %v1811
    %v1820 = vmul.f32 %v1774, %v1812
    %v1821 = vmul.f32 %v1776, %v1813
    %v1822 = vmul.f32 %v1778, %v1814
    %v1823 = vmul.f32 %v1780, %v1815
    %v1824 = vmul.f32 %v1782, %v1816
    %v1825 = vmul.f32 %v1784, %v1817
    %v1826 = vmul.f32 %v1786, %v1818
    %v1828 = vsel %vm1122, %v1819, 0
    %1830 = vmatprep.subr.mxu0 0.0
    %1831 = vmatpush1.msra.mxu0 0.0
    %1832 = vmatprep.subr.mxu0 0.0
    %1833 = vmatpush1.msra.mxu0 0.0
    %1834 = vmatprep.subr.mxu0 0.0
    %1835 = vmatpush1.msra.mxu0 0.0
    %1836 = vmatprep.subr.mxu0 0.0
    %1837 = vmatpush1.msra.mxu0 0.0
    %1838 = vmatprep.subr.mxu0 0.0
    %1839 = vmatpush1.msra.mxu0 0.0
    %1840 = vmatprep.subr.mxu0 0.0
    %1841 = vmatpush1.msra.mxu0 0.0
    %1842 = vmatprep.subr.mxu0 0.0
    %1843 = vmatpush1.msra.mxu0 0.0
    %1844 = vmatprep.subr.mxu0 0.0
    %1845 = vmatpush1.msra.mxu0 0.0
    %1846 = vmatprep.subr.mxu0 0.0
    %1847 = vmatpush1.msra.mxu0 0.0
    %1848 = vmatprep.subr.mxu0 0.0
    %1849 = vmatpush1.msra.mxu0 0.0
    %1850 = vmatprep.subr.mxu0 0.0
    %1851 = vmatpush1.msra.mxu0 0.0
    %1852 = vmatprep.subr.mxu0 0.0
    %1853 = vmatpush1.msra.mxu0 0.0
    %1854 = vmatprep.subr.mxu0 0.0
    %1855 = vmatpush1.msra.mxu0 0.0
    %1856 = vmatprep.subr.mxu0 0.0
    %1857 = vmatpush1.msra.mxu0 0.0
    %1858 = vmatprep.subr.mxu0 0.0
    %1859 = vmatpush1.msra.mxu0 0.0
    %1860 = vmatprep.subr.mxu0 0.0
    %1861 = vmatpush1.msra.mxu0 %v1050
    %1862 = vmatprep.subr.mxu0 0.0
    %1863 = vmatpush2.msra.mxu0 0.0
    %1864 = vmatprep.subr.mxu0 0.0
    %1865 = vmatpush2.msra.mxu0 0.0
    %1866 = vmatprep.subr.mxu0 0.0
    %1867 = vmatpush2.msra.mxu0 0.0
    %1868 = vmatprep.subr.mxu0 0.0
    %1869 = vmatpush2.msra.mxu0 0.0
    %1870 = vmatprep.subr.mxu0 0.0
    %1871 = vmatpush2.msra.mxu0 0.0
    %1872 = vmatprep.subr.mxu0 0.0
    %1873 = vmatpush2.msra.mxu0 0.0
    %1874 = vmatprep.subr.mxu0 0.0
    %1875 = vmatpush2.msra.mxu0 0.0
    %1876 = vmatprep.subr.mxu0 0.0
    %1877 = vmatpush2.msra.mxu0 0.0
    %1878 = vmatprep.subr.mxu0 0.0
    %1879 = vmatpush2.msra.mxu0 0.0
    %1880 = vmatprep.subr.mxu0 0.0
    %1881 = vmatpush2.msra.mxu0 0.0
    %1882 = vmatprep.subr.mxu0 0.0
    %1883 = vmatpush2.msra.mxu0 0.0
    %1884 = vmatprep.subr.mxu0 0.0
    %1885 = vmatpush2.msra.mxu0 0.0
    %1886 = vmatprep.subr.mxu0 0.0
    %1887 = vmatpush2.msra.mxu0 0.0
    %1888 = vmatprep.subr.mxu0 0.0
    %1889 = vmatpush2.msra.mxu0 0.0
    %1890 = vmatprep.subr.mxu0 0.0
    %1891 = vmatpush2.msra.mxu0 0.0
    %1892 = vmatprep.subr.mxu0 0.0
    %1893 = vmatpush2.msra.mxu0 0.0
    %1894 = vmatprep.mubr.f32.mxu0 0.0
    %1895 = vmatmul.mubr.f32.gmra.mxu0 %v1828
    %v1896 = vpop.f32.mrf.mxu0
    %v1897 = vadd.f32 0.0, %v1896
    %v1898 = vpop.f32.mrf.mxu0
    %1899 = vdwg.mxu0
    %v1901 = vsel %vm1122, %v1820, 0
    %1903 = vmatprep.subr.mxu0 0.0
    %1904 = vmatpush1.msra.mxu0 0.0
    %1905 = vmatprep.subr.mxu0 0.0
    %1906 = vmatpush1.msra.mxu0 0.0
    %1907 = vmatprep.subr.mxu0 0.0
    %1908 = vmatpush1.msra.mxu0 0.0
    %1909 = vmatprep.subr.mxu0 0.0
    %1910 = vmatpush1.msra.mxu0 0.0
    %1911 = vmatprep.subr.mxu0 0.0
    %1912 = vmatpush1.msra.mxu0 0.0
    %1913 = vmatprep.subr.mxu0 0.0
    %1914 = vmatpush1.msra.mxu0 0.0
    %1915 = vmatprep.subr.mxu0 0.0
    %1916 = vmatpush1.msra.mxu0 0.0
    %1917 = vmatprep.subr.mxu0 0.0
    %1918 = vmatpush1.msra.mxu0 0.0
    %1919 = vmatprep.subr.mxu0 0.0
    %1920 = vmatpush1.msra.mxu0 0.0
    %1921 = vmatprep.subr.mxu0 0.0
    %1922 = vmatpush1.msra.mxu0 0.0
    %1923 = vmatprep.subr.mxu0 0.0
    %1924 = vmatpush1.msra.mxu0 0.0
    %1925 = vmatprep.subr.mxu0 0.0
    %1926 = vmatpush1.msra.mxu0 0.0
    %1927 = vmatprep.subr.mxu0 0.0
    %1928 = vmatpush1.msra.mxu0 0.0
    %1929 = vmatprep.subr.mxu0 0.0
    %1930 = vmatpush1.msra.mxu0 0.0
    %1931 = vmatprep.subr.mxu0 0.0
    %1932 = vmatpush1.msra.mxu0 0.0
    %1933 = vmatprep.subr.mxu0 0.0
    %1934 = vmatpush1.msra.mxu0 %v1051
    %1935 = vmatprep.subr.mxu0 0.0
    %1936 = vmatpush2.msra.mxu0 0.0
    %1937 = vmatprep.subr.mxu0 0.0
    %1938 = vmatpush2.msra.mxu0 0.0
    %1939 = vmatprep.subr.mxu0 0.0
    %1940 = vmatpush2.msra.mxu0 0.0
    %1941 = vmatprep.subr.mxu0 0.0
    %1942 = vmatpush2.msra.mxu0 0.0
    %1943 = vmatprep.subr.mxu0 0.0
    %1944 = vmatpush2.msra.mxu0 0.0
    %1945 = vmatprep.subr.mxu0 0.0
    %1946 = vmatpush2.msra.mxu0 0.0
    %1947 = vmatprep.subr.mxu0 0.0
    %1948 = vmatpush2.msra.mxu0 0.0
    %1949 = vmatprep.subr.mxu0 0.0
    %1950 = vmatpush2.msra.mxu0 0.0
    %1951 = vmatprep.subr.mxu0 0.0
    %1952 = vmatpush2.msra.mxu0 0.0
    %1953 = vmatprep.subr.mxu0 0.0
    %1954 = vmatpush2.msra.mxu0 0.0
    %1955 = vmatprep.subr.mxu0 0.0
    %1956 = vmatpush2.msra.mxu0 0.0
    %1957 = vmatprep.subr.mxu0 0.0
    %1958 = vmatpush2.msra.mxu0 0.0
    %1959 = vmatprep.subr.mxu0 0.0
    %1960 = vmatpush2.msra.mxu0 0.0
    %1961 = vmatprep.subr.mxu0 0.0
    %1962 = vmatpush2.msra.mxu0 0.0
    %1963 = vmatprep.subr.mxu0 0.0
    %1964 = vmatpush2.msra.mxu0 0.0
    %1965 = vmatprep.subr.mxu0 0.0
    %1966 = vmatpush2.msra.mxu0 0.0
    %1967 = vmatprep.mubr.f32.mxu0 0.0
    %1968 = vmatmul.mubr.f32.gmra.mxu0 %v1901
    %v1969 = vpop.f32.mrf.mxu0
    %v1970 = vadd.f32 0.0, %v1969
    %v1971 = vpop.f32.mrf.mxu0
    %1972 = vdwg.mxu0
    %v1974 = vsel %vm1122, %v1821, 0
    %1976 = vmatprep.subr.mxu0 0.0
    %1977 = vmatpush1.msra.mxu0 0.0
    %1978 = vmatprep.subr.mxu0 0.0
    %1979 = vmatpush1.msra.mxu0 0.0
    %1980 = vmatprep.subr.mxu0 0.0
    %1981 = vmatpush1.msra.mxu0 0.0
    %1982 = vmatprep.subr.mxu0 0.0
    %1983 = vmatpush1.msra.mxu0 0.0
    %1984 = vmatprep.subr.mxu0 0.0
    %1985 = vmatpush1.msra.mxu0 0.0
    %1986 = vmatprep.subr.mxu0 0.0
    %1987 = vmatpush1.msra.mxu0 0.0
    %1988 = vmatprep.subr.mxu0 0.0
    %1989 = vmatpush1.msra.mxu0 0.0
    %1990 = vmatprep.subr.mxu0 0.0
    %1991 = vmatpush1.msra.mxu0 0.0
    %1992 = vmatprep.subr.mxu0 0.0
    %1993 = vmatpush1.msra.mxu0 0.0
    %1994 = vmatprep.subr.mxu0 0.0
    %1995 = vmatpush1.msra.mxu0 0.0
    %1996 = vmatprep.subr.mxu0 0.0
    %1997 = vmatpush1.msra.mxu0 0.0
    %1998 = vmatprep.subr.mxu0 0.0
    %1999 = vmatpush1.msra.mxu0 0.0
    %2000 = vmatprep.subr.mxu0 0.0
    %2001 = vmatpush1.msra.mxu0 0.0
    %2002 = vmatprep.subr.mxu0 0.0
    %2003 = vmatpush1.msra.mxu0 0.0
    %2004 = vmatprep.subr.mxu0 0.0
    %2005 = vmatpush1.msra.mxu0 0.0
    %2006 = vmatprep.subr.mxu0 0.0
    %2007 = vmatpush1.msra.mxu0 %v1052
    %2008 = vmatprep.subr.mxu0 0.0
    %2009 = vmatpush2.msra.mxu0 0.0
    %2010 = vmatprep.subr.mxu0 0.0
    %2011 = vmatpush2.msra.mxu0 0.0
    %2012 = vmatprep.subr.mxu0 0.0
    %2013 = vmatpush2.msra.mxu0 0.0
    %2014 = vmatprep.subr.mxu0 0.0
    %2015 = vmatpush2.msra.mxu0 0.0
    %2016 = vmatprep.subr.mxu0 0.0
    %2017 = vmatpush2.msra.mxu0 0.0
    %2018 = vmatprep.subr.mxu0 0.0
    %2019 = vmatpush2.msra.mxu0 0.0
    %2020 = vmatprep.subr.mxu0 0.0
    %2021 = vmatpush2.msra.mxu0 0.0
    %2022 = vmatprep.subr.mxu0 0.0
    %2023 = vmatpush2.msra.mxu0 0.0
    %2024 = vmatprep.subr.mxu0 0.0
    %2025 = vmatpush2.msra.mxu0 0.0
    %2026 = vmatprep.subr.mxu0 0.0
    %2027 = vmatpush2.msra.mxu0 0.0
    %2028 = vmatprep.subr.mxu0 0.0
    %2029 = vmatpush2.msra.mxu0 0.0
    %2030 = vmatprep.subr.mxu0 0.0
    %2031 = vmatpush2.msra.mxu0 0.0
    %2032 = vmatprep.subr.mxu0 0.0
    %2033 = vmatpush2.msra.mxu0 0.0
    %2034 = vmatprep.subr.mxu0 0.0
    %2035 = vmatpush2.msra.mxu0 0.0
    %2036 = vmatprep.subr.mxu0 0.0
    %2037 = vmatpush2.msra.mxu0 0.0
    %2038 = vmatprep.subr.mxu0 0.0
    %2039 = vmatpush2.msra.mxu0 0.0
    %2040 = vmatprep.mubr.f32.mxu0 0.0
    %2041 = vmatmul.mubr.f32.gmra.mxu0 %v1974
    %v2042 = vpop.f32.mrf.mxu0
    %v2043 = vadd.f32 0.0, %v2042
    %v2044 = vpop.f32.mrf.mxu0
    %2045 = vdwg.mxu0
    %v2047 = vsel %vm1122, %v1822, 0
    %2049 = vmatprep.subr.mxu0 0.0
    %2050 = vmatpush1.msra.mxu0 0.0
    %2051 = vmatprep.subr.mxu0 0.0
    %2052 = vmatpush1.msra.mxu0 0.0
    %2053 = vmatprep.subr.mxu0 0.0
    %2054 = vmatpush1.msra.mxu0 0.0
    %2055 = vmatprep.subr.mxu0 0.0
    %2056 = vmatpush1.msra.mxu0 0.0
    %2057 = vmatprep.subr.mxu0 0.0
    %2058 = vmatpush1.msra.mxu0 0.0
    %2059 = vmatprep.subr.mxu0 0.0
    %2060 = vmatpush1.msra.mxu0 0.0
    %2061 = vmatprep.subr.mxu0 0.0
    %2062 = vmatpush1.msra.mxu0 0.0
    %2063 = vmatprep.subr.mxu0 0.0
    %2064 = vmatpush1.msra.mxu0 0.0
    %2065 = vmatprep.subr.mxu0 0.0
    %2066 = vmatpush1.msra.mxu0 0.0
    %2067 = vmatprep.subr.mxu0 0.0
    %2068 = vmatpush1.msra.mxu0 0.0
    %2069 = vmatprep.subr.mxu0 0.0
    %2070 = vmatpush1.msra.mxu0 0.0
    %2071 = vmatprep.subr.mxu0 0.0
    %2072 = vmatpush1.msra.mxu0 0.0
    %2073 = vmatprep.subr.mxu0 0.0
    %2074 = vmatpush1.msra.mxu0 0.0
    %2075 = vmatprep.subr.mxu0 0.0
    %2076 = vmatpush1.msra.mxu0 0.0
    %2077 = vmatprep.subr.mxu0 0.0
    %2078 = vmatpush1.msra.mxu0 0.0
    %2079 = vmatprep.subr.mxu0 0.0
    %2080 = vmatpush1.msra.mxu0 %v1053
    %2081 = vmatprep.subr.mxu0 0.0
    %2082 = vmatpush2.msra.mxu0 0.0
    %2083 = vmatprep.subr.mxu0 0.0
    %2084 = vmatpush2.msra.mxu0 0.0
    %2085 = vmatprep.subr.mxu0 0.0
    %2086 = vmatpush2.msra.mxu0 0.0
    %2087 = vmatprep.subr.mxu0 0.0
    %2088 = vmatpush2.msra.mxu0 0.0
    %2089 = vmatprep.subr.mxu0 0.0
    %2090 = vmatpush2.msra.mxu0 0.0
    %2091 = vmatprep.subr.mxu0 0.0
    %2092 = vmatpush2.msra.mxu0 0.0
    %2093 = vmatprep.subr.mxu0 0.0
    %2094 = vmatpush2.msra.mxu0 0.0
    %2095 = vmatprep.subr.mxu0 0.0
    %2096 = vmatpush2.msra.mxu0 0.0
    %2097 = vmatprep.subr.mxu0 0.0
    %2098 = vmatpush2.msra.mxu0 0.0
    %2099 = vmatprep.subr.mxu0 0.0
    %2100 = vmatpush2.msra.mxu0 0.0
    %2101 = vmatprep.subr.mxu0 0.0
    %2102 = vmatpush2.msra.mxu0 0.0
    %2103 = vmatprep.subr.mxu0 0.0
    %2104 = vmatpush2.msra.mxu0 0.0
    %2105 = vmatprep.subr.mxu0 0.0
    %2106 = vmatpush2.msra.mxu0 0.0
    %2107 = vmatprep.subr.mxu0 0.0
    %2108 = vmatpush2.msra.mxu0 0.0
    %2109 = vmatprep.subr.mxu0 0.0
    %2110 = vmatpush2.msra.mxu0 0.0
    %2111 = vmatprep.subr.mxu0 0.0
    %2112 = vmatpush2.msra.mxu0 0.0
    %2113 = vmatprep.mubr.f32.mxu0 0.0
    %2114 = vmatmul.mubr.f32.gmra.mxu0 %v2047
    %v2115 = vpop.f32.mrf.mxu0
    %v2116 = vadd.f32 0.0, %v2115
    %v2117 = vpop.f32.mrf.mxu0
    %2118 = vdwg.mxu0
    %v2120 = vsel %vm1122, %v1823, 0
    %2122 = vmatprep.subr.mxu0 0.0
    %2123 = vmatpush1.msra.mxu0 0.0
    %2124 = vmatprep.subr.mxu0 0.0
    %2125 = vmatpush1.msra.mxu0 0.0
    %2126 = vmatprep.subr.mxu0 0.0
    %2127 = vmatpush1.msra.mxu0 0.0
    %2128 = vmatprep.subr.mxu0 0.0
    %2129 = vmatpush1.msra.mxu0 0.0
    %2130 = vmatprep.subr.mxu0 0.0
    %2131 = vmatpush1.msra.mxu0 0.0
    %2132 = vmatprep.subr.mxu0 0.0
    %2133 = vmatpush1.msra.mxu0 0.0
    %2134 = vmatprep.subr.mxu0 0.0
    %2135 = vmatpush1.msra.mxu0 0.0
    %2136 = vmatprep.subr.mxu0 0.0
    %2137 = vmatpush1.msra.mxu0 0.0
    %2138 = vmatprep.subr.mxu0 0.0
    %2139 = vmatpush1.msra.mxu0 0.0
    %2140 = vmatprep.subr.mxu0 0.0
    %2141 = vmatpush1.msra.mxu0 0.0
    %2142 = vmatprep.subr.mxu0 0.0
    %2143 = vmatpush1.msra.mxu0 0.0
    %2144 = vmatprep.subr.mxu0 0.0
    %2145 = vmatpush1.msra.mxu0 0.0
    %2146 = vmatprep.subr.mxu0 0.0
    %2147 = vmatpush1.msra.mxu0 0.0
    %2148 = vmatprep.subr.mxu0 0.0
    %2149 = vmatpush1.msra.mxu0 0.0
    %2150 = vmatprep.subr.mxu0 0.0
    %2151 = vmatpush1.msra.mxu0 0.0
    %2152 = vmatprep.subr.mxu0 0.0
    %2153 = vmatpush1.msra.mxu0 %v1118
    %2154 = vmatprep.subr.mxu0 0.0
    %2155 = vmatpush2.msra.mxu0 0.0
    %2156 = vmatprep.subr.mxu0 0.0
    %2157 = vmatpush2.msra.mxu0 0.0
    %2158 = vmatprep.subr.mxu0 0.0
    %2159 = vmatpush2.msra.mxu0 0.0
    %2160 = vmatprep.subr.mxu0 0.0
    %2161 = vmatpush2.msra.mxu0 0.0
    %2162 = vmatprep.subr.mxu0 0.0
    %2163 = vmatpush2.msra.mxu0 0.0
    %2164 = vmatprep.subr.mxu0 0.0
    %2165 = vmatpush2.msra.mxu0 0.0
    %2166 = vmatprep.subr.mxu0 0.0
    %2167 = vmatpush2.msra.mxu0 0.0
    %2168 = vmatprep.subr.mxu0 0.0
    %2169 = vmatpush2.msra.mxu0 0.0
    %2170 = vmatprep.subr.mxu0 0.0
    %2171 = vmatpush2.msra.mxu0 0.0
    %2172 = vmatprep.subr.mxu0 0.0
    %2173 = vmatpush2.msra.mxu0 0.0
    %2174 = vmatprep.subr.mxu0 0.0
    %2175 = vmatpush2.msra.mxu0 0.0
    %2176 = vmatprep.subr.mxu0 0.0
    %2177 = vmatpush2.msra.mxu0 0.0
    %2178 = vmatprep.subr.mxu0 0.0
    %2179 = vmatpush2.msra.mxu0 0.0
    %2180 = vmatprep.subr.mxu0 0.0
    %2181 = vmatpush2.msra.mxu0 0.0
    %2182 = vmatprep.subr.mxu0 0.0
    %2183 = vmatpush2.msra.mxu0 0.0
    %2184 = vmatprep.subr.mxu0 0.0
    %2185 = vmatpush2.msra.mxu0 0.0
    %2186 = vmatprep.mubr.f32.mxu0 0.0
    %2187 = vmatmul.mubr.f32.gmra.mxu0 %v2120
    %v2188 = vpop.f32.mrf.mxu0
    %v2189 = vadd.f32 0.0, %v2188
    %v2190 = vpop.f32.mrf.mxu0
    %2191 = vdwg.mxu0
    %v2193 = vsel %vm1122, %v1824, 0
    %2195 = vmatprep.subr.mxu0 0.0
    %2196 = vmatpush1.msra.mxu0 0.0
    %2197 = vmatprep.subr.mxu0 0.0
    %2198 = vmatpush1.msra.mxu0 0.0
    %2199 = vmatprep.subr.mxu0 0.0
    %2200 = vmatpush1.msra.mxu0 0.0
    %2201 = vmatprep.subr.mxu0 0.0
    %2202 = vmatpush1.msra.mxu0 0.0
    %2203 = vmatprep.subr.mxu0 0.0
    %2204 = vmatpush1.msra.mxu0 0.0
    %2205 = vmatprep.subr.mxu0 0.0
    %2206 = vmatpush1.msra.mxu0 0.0
    %2207 = vmatprep.subr.mxu0 0.0
    %2208 = vmatpush1.msra.mxu0 0.0
    %2209 = vmatprep.subr.mxu0 0.0
    %2210 = vmatpush1.msra.mxu0 0.0
    %2211 = vmatprep.subr.mxu0 0.0
    %2212 = vmatpush1.msra.mxu0 0.0
    %2213 = vmatprep.subr.mxu0 0.0
    %2214 = vmatpush1.msra.mxu0 0.0
    %2215 = vmatprep.subr.mxu0 0.0
    %2216 = vmatpush1.msra.mxu0 0.0
    %2217 = vmatprep.subr.mxu0 0.0
    %2218 = vmatpush1.msra.mxu0 0.0
    %2219 = vmatprep.subr.mxu0 0.0
    %2220 = vmatpush1.msra.mxu0 0.0
    %2221 = vmatprep.subr.mxu0 0.0
    %2222 = vmatpush1.msra.mxu0 0.0
    %2223 = vmatprep.subr.mxu0 0.0
    %2224 = vmatpush1.msra.mxu0 0.0
    %2225 = vmatprep.subr.mxu0 0.0
    %2226 = vmatpush1.msra.mxu0 %v1119
    %2227 = vmatprep.subr.mxu0 0.0
    %2228 = vmatpush2.msra.mxu0 0.0
    %2229 = vmatprep.subr.mxu0 0.0
    %2230 = vmatpush2.msra.mxu0 0.0
    %2231 = vmatprep.subr.mxu0 0.0
    %2232 = vmatpush2.msra.mxu0 0.0
    %2233 = vmatprep.subr.mxu0 0.0
    %2234 = vmatpush2.msra.mxu0 0.0
    %2235 = vmatprep.subr.mxu0 0.0
    %2236 = vmatpush2.msra.mxu0 0.0
    %2237 = vmatprep.subr.mxu0 0.0
    %2238 = vmatpush2.msra.mxu0 0.0
    %2239 = vmatprep.subr.mxu0 0.0
    %2240 = vmatpush2.msra.mxu0 0.0
    %2241 = vmatprep.subr.mxu0 0.0
    %2242 = vmatpush2.msra.mxu0 0.0
    %2243 = vmatprep.subr.mxu0 0.0
    %2244 = vmatpush2.msra.mxu0 0.0
    %2245 = vmatprep.subr.mxu0 0.0
    %2246 = vmatpush2.msra.mxu0 0.0
    %2247 = vmatprep.subr.mxu0 0.0
    %2248 = vmatpush2.msra.mxu0 0.0
    %2249 = vmatprep.subr.mxu0 0.0
    %2250 = vmatpush2.msra.mxu0 0.0
    %2251 = vmatprep.subr.mxu0 0.0
    %2252 = vmatpush2.msra.mxu0 0.0
    %2253 = vmatprep.subr.mxu0 0.0
    %2254 = vmatpush2.msra.mxu0 0.0
    %2255 = vmatprep.subr.mxu0 0.0
    %2256 = vmatpush2.msra.mxu0 0.0
    %2257 = vmatprep.subr.mxu0 0.0
    %2258 = vmatpush2.msra.mxu0 0.0
    %2259 = vmatprep.mubr.f32.mxu0 0.0
    %2260 = vmatmul.mubr.f32.gmra.mxu0 %v2193
    %v2261 = vpop.f32.mrf.mxu0
    %v2262 = vadd.f32 0.0, %v2261
    %v2263 = vpop.f32.mrf.mxu0
    %2264 = vdwg.mxu0
    %v2266 = vsel %vm1122, %v1825, 0
    %2268 = vmatprep.subr.mxu0 0.0
    %2269 = vmatpush1.msra.mxu0 0.0
    %2270 = vmatprep.subr.mxu0 0.0
    %2271 = vmatpush1.msra.mxu0 0.0
    %2272 = vmatprep.subr.mxu0 0.0
    %2273 = vmatpush1.msra.mxu0 0.0
    %2274 = vmatprep.subr.mxu0 0.0
    %2275 = vmatpush1.msra.mxu0 0.0
    %2276 = vmatprep.subr.mxu0 0.0
    %2277 = vmatpush1.msra.mxu0 0.0
    %2278 = vmatprep.subr.mxu0 0.0
    %2279 = vmatpush1.msra.mxu0 0.0
    %2280 = vmatprep.subr.mxu0 0.0
    %2281 = vmatpush1.msra.mxu0 0.0
    %2282 = vmatprep.subr.mxu0 0.0
    %2283 = vmatpush1.msra.mxu0 0.0
    %2284 = vmatprep.subr.mxu0 0.0
    %2285 = vmatpush1.msra.mxu0 0.0
    %2286 = vmatprep.subr.mxu0 0.0
    %2287 = vmatpush1.msra.mxu0 0.0
    %2288 = vmatprep.subr.mxu0 0.0
    %2289 = vmatpush1.msra.mxu0 0.0
    %2290 = vmatprep.subr.mxu0 0.0
    %2291 = vmatpush1.msra.mxu0 0.0
    %2292 = vmatprep.subr.mxu0 0.0
    %2293 = vmatpush1.msra.mxu0 0.0
    %2294 = vmatprep.subr.mxu0 0.0
    %2295 = vmatpush1.msra.mxu0 0.0
    %2296 = vmatprep.subr.mxu0 0.0
    %2297 = vmatpush1.msra.mxu0 0.0
    %2298 = vmatprep.subr.mxu0 0.0
    %2299 = vmatpush1.msra.mxu0 %v1120
    %2300 = vmatprep.subr.mxu0 0.0
    %2301 = vmatpush2.msra.mxu0 0.0
    %2302 = vmatprep.subr.mxu0 0.0
    %2303 = vmatpush2.msra.mxu0 0.0
    %2304 = vmatprep.subr.mxu0 0.0
    %2305 = vmatpush2.msra.mxu0 0.0
    %2306 = vmatprep.subr.mxu0 0.0
    %2307 = vmatpush2.msra.mxu0 0.0
    %2308 = vmatprep.subr.mxu0 0.0
    %2309 = vmatpush2.msra.mxu0 0.0
    %2310 = vmatprep.subr.mxu0 0.0
    %2311 = vmatpush2.msra.mxu0 0.0
    %2312 = vmatprep.subr.mxu0 0.0
    %2313 = vmatpush2.msra.mxu0 0.0
    %2314 = vmatprep.subr.mxu0 0.0
    %2315 = vmatpush2.msra.mxu0 0.0
    %2316 = vmatprep.subr.mxu0 0.0
    %2317 = vmatpush2.msra.mxu0 0.0
    %2318 = vmatprep.subr.mxu0 0.0
    %2319 = vmatpush2.msra.mxu0 0.0
    %2320 = vmatprep.subr.mxu0 0.0
    %2321 = vmatpush2.msra.mxu0 0.0
    %2322 = vmatprep.subr.mxu0 0.0
    %2323 = vmatpush2.msra.mxu0 0.0
    %2324 = vmatprep.subr.mxu0 0.0
    %2325 = vmatpush2.msra.mxu0 0.0
    %2326 = vmatprep.subr.mxu0 0.0
    %2327 = vmatpush2.msra.mxu0 0.0
    %2328 = vmatprep.subr.mxu0 0.0
    %2329 = vmatpush2.msra.mxu0 0.0
    %2330 = vmatprep.subr.mxu0 0.0
    %2331 = vmatpush2.msra.mxu0 0.0
    %2332 = vmatprep.mubr.f32.mxu0 0.0
    %2333 = vmatmul.mubr.f32.gmra.mxu0 %v2266
    %v2334 = vpop.f32.mrf.mxu0
    %v2335 = vadd.f32 0.0, %v2334
    %v2336 = vpop.f32.mrf.mxu0
    %2337 = vdwg.mxu0
    %v2339 = vsel %vm1122, %v1826, 0
    %2341 = vmatprep.subr.mxu0 0.0
    %2342 = vmatpush1.msra.mxu0 0.0
    %2343 = vmatprep.subr.mxu0 0.0
    %2344 = vmatpush1.msra.mxu0 0.0
    %2345 = vmatprep.subr.mxu0 0.0
    %2346 = vmatpush1.msra.mxu0 0.0
    %2347 = vmatprep.subr.mxu0 0.0
    %2348 = vmatpush1.msra.mxu0 0.0
    %2349 = vmatprep.subr.mxu0 0.0
    %2350 = vmatpush1.msra.mxu0 0.0
    %2351 = vmatprep.subr.mxu0 0.0
    %2352 = vmatpush1.msra.mxu0 0.0
    %2353 = vmatprep.subr.mxu0 0.0
    %2354 = vmatpush1.msra.mxu0 0.0
    %2355 = vmatprep.subr.mxu0 0.0
    %2356 = vmatpush1.msra.mxu0 0.0
    %2357 = vmatprep.subr.mxu0 0.0
    %2358 = vmatpush1.msra.mxu0 0.0
    %2359 = vmatprep.subr.mxu0 0.0
    %2360 = vmatpush1.msra.mxu0 0.0
    %2361 = vmatprep.subr.mxu0 0.0
    %2362 = vmatpush1.msra.mxu0 0.0
    %2363 = vmatprep.subr.mxu0 0.0
    %2364 = vmatpush1.msra.mxu0 0.0
    %2365 = vmatprep.subr.mxu0 0.0
    %2366 = vmatpush1.msra.mxu0 0.0
    %2367 = vmatprep.subr.mxu0 0.0
    %2368 = vmatpush1.msra.mxu0 0.0
    %2369 = vmatprep.subr.mxu0 0.0
    %2370 = vmatpush1.msra.mxu0 0.0
    %2371 = vmatprep.subr.mxu0 0.0
    %2372 = vmatpush1.msra.mxu0 %v1121
    %2373 = vmatprep.subr.mxu0 0.0
    %2374 = vmatpush2.msra.mxu0 0.0
    %2375 = vmatprep.subr.mxu0 0.0
    %2376 = vmatpush2.msra.mxu0 0.0
    %2377 = vmatprep.subr.mxu0 0.0
    %2378 = vmatpush2.msra.mxu0 0.0
    %2379 = vmatprep.subr.mxu0 0.0
    %2380 = vmatpush2.msra.mxu0 0.0
    %2381 = vmatprep.subr.mxu0 0.0
    %2382 = vmatpush2.msra.mxu0 0.0
    %2383 = vmatprep.subr.mxu0 0.0
    %2384 = vmatpush2.msra.mxu0 0.0
    %2385 = vmatprep.subr.mxu0 0.0
    %2386 = vmatpush2.msra.mxu0 0.0
    %2387 = vmatprep.subr.mxu0 0.0
    %2388 = vmatpush2.msra.mxu0 0.0
    %2389 = vmatprep.subr.mxu0 0.0
    %2390 = vmatpush2.msra.mxu0 0.0
    %2391 = vmatprep.subr.mxu0 0.0
    %2392 = vmatpush2.msra.mxu0 0.0
    %2393 = vmatprep.subr.mxu0 0.0
    %2394 = vmatpush2.msra.mxu0 0.0
    %2395 = vmatprep.subr.mxu0 0.0
    %2396 = vmatpush2.msra.mxu0 0.0
    %2397 = vmatprep.subr.mxu0 0.0
    %2398 = vmatpush2.msra.mxu0 0.0
    %2399 = vmatprep.subr.mxu0 0.0
    %2400 = vmatpush2.msra.mxu0 0.0
    %2401 = vmatprep.subr.mxu0 0.0
    %2402 = vmatpush2.msra.mxu0 0.0
    %2403 = vmatprep.subr.mxu0 0.0
    %2404 = vmatpush2.msra.mxu0 0.0
    %2405 = vmatprep.mubr.f32.mxu0 0.0
    %2406 = vmatmul.mubr.f32.gmra.mxu0 %v2339
    %v2407 = vpop.f32.mrf.mxu0
    %v2408 = vadd.f32 0.0, %v2407
    %v2409 = vpop.f32.mrf.mxu0
    %2410 = vdwg.mxu0
    %v2411 = vcombine.low %v1897, %v2043
    %v2412 = vcombine.high %v1897, %v2043
    %v2414 = vunpack.c.l.s4 1983009808
    %v2415 = vunpack.c.0.s8 %v2414
    %v2416 = vlaneseq
    %v2417 = vshrl.u32 %v2416, 7
    %v2418 = vsub.s32 %v2415, %v2417
    %v2419 = vrot.slane %v2411, %v2418
    %v2421 = vunpack.c.l.s4 1983009808
    %v2422 = vunpack.c.0.s8 %v2421
    %v2423 = vlaneseq
    %v2424 = vshrl.u32 %v2423, 7
    %v2425 = vsub.s32 %v2422, %v2424
    %v2426 = vrot.slane %v2412, %v2425
    %v2427 = vcombine.low %v1970, %v2116
    %v2428 = vcombine.high %v1970, %v2116
    %v2430 = vunpack.c.l.s4 1983009808
    %v2431 = vunpack.c.0.s8 %v2430
    %v2432 = vlaneseq
    %v2433 = vshrl.u32 %v2432, 7
    %v2434 = vsub.s32 %v2431, %v2433
    %v2435 = vrot.slane %v2427, %v2434
    %v2437 = vunpack.c.l.s4 1983009808
    %v2438 = vunpack.c.0.s8 %v2437
    %v2439 = vlaneseq
    %v2440 = vshrl.u32 %v2439, 7
    %v2441 = vsub.s32 %v2438, %v2440
    %v2442 = vrot.slane %v2428, %v2441
    %v2443 = vcombine.low %v2419, %v2435
    %v2444 = vcombine.high %v2419, %v2435
    %v2446 = vunpack.c.l.s4 1934713408
    %v2447 = vunpack.c.0.s8 %v2446
    %v2448 = vlaneseq
    %v2449 = vshrl.u32 %v2448, 7
    %v2450 = vsub.s32 %v2447, %v2449
    %v2451 = vrot.slane %v2443, %v2450
    %v2453 = vunpack.c.l.s4 1934713408
    %v2454 = vunpack.c.0.s8 %v2453
    %v2455 = vlaneseq
    %v2456 = vshrl.u32 %v2455, 7
    %v2457 = vsub.s32 %v2454, %v2456
    %v2458 = vrot.slane %v2444, %v2457
    %v2459 = vcombine.low %v2426, %v2442
    %v2460 = vcombine.high %v2426, %v2442
    %v2462 = vunpack.c.l.s4 1934713408
    %v2463 = vunpack.c.0.s8 %v2462
    %v2464 = vlaneseq
    %v2465 = vshrl.u32 %v2464, 7
    %v2466 = vsub.s32 %v2463, %v2465
    %v2467 = vrot.slane %v2459, %v2466
    %v2469 = vunpack.c.l.s4 1934713408
    %v2470 = vunpack.c.0.s8 %v2469
    %v2471 = vlaneseq
    %v2472 = vshrl.u32 %v2471, 7
    %v2473 = vsub.s32 %v2470, %v2472
    %v2474 = vrot.slane %v2460, %v2473
    %v2475 = vcombine.high %v2451, 0.0
    %v2476 = vcombine.high %v2458, 0.0
    %v2477 = vcombine.high %v2467, 0.0
    %v2478 = vcombine.high %v2474, 0.0
    %v2479 = vcombine.low %v2189, %v2335
    %v2480 = vcombine.high %v2189, %v2335
    %v2482 = vunpack.c.l.s4 1983009808
    %v2483 = vunpack.c.0.s8 %v2482
    %v2484 = vlaneseq
    %v2485 = vshrl.u32 %v2484, 7
    %v2486 = vsub.s32 %v2483, %v2485
    %v2487 = vrot.slane %v2479, %v2486
    %v2489 = vunpack.c.l.s4 1983009808
    %v2490 = vunpack.c.0.s8 %v2489
    %v2491 = vlaneseq
    %v2492 = vshrl.u32 %v2491, 7
    %v2493 = vsub.s32 %v2490, %v2492
    %v2494 = vrot.slane %v2480, %v2493
    %v2495 = vcombine.low %v2262, %v2408
    %v2496 = vcombine.high %v2262, %v2408
    %v2498 = vunpack.c.l.s4 1983009808
    %v2499 = vunpack.c.0.s8 %v2498
    %v2500 = vlaneseq
    %v2501 = vshrl.u32 %v2500, 7
    %v2502 = vsub.s32 %v2499, %v2501
    %v2503 = vrot.slane %v2495, %v2502
    %v2505 = vunpack.c.l.s4 1983009808
    %v2506 = vunpack.c.0.s8 %v2505
    %v2507 = vlaneseq
    %v2508 = vshrl.u32 %v2507, 7
    %v2509 = vsub.s32 %v2506, %v2508
    %v2510 = vrot.slane %v2496, %v2509
    %v2511 = vcombine.low %v2487, %v2503
    %v2512 = vcombine.high %v2487, %v2503
    %v2514 = vunpack.c.l.s4 1934713408
    %v2515 = vunpack.c.0.s8 %v2514
    %v2516 = vlaneseq
    %v2517 = vshrl.u32 %v2516, 7
    %v2518 = vsub.s32 %v2515, %v2517
    %v2519 = vrot.slane %v2511, %v2518
    %v2521 = vunpack.c.l.s4 1934713408
    %v2522 = vunpack.c.0.s8 %v2521
    %v2523 = vlaneseq
    %v2524 = vshrl.u32 %v2523, 7
    %v2525 = vsub.s32 %v2522, %v2524
    %v2526 = vrot.slane %v2512, %v2525
    %v2527 = vcombine.low %v2494, %v2510
    %v2528 = vcombine.high %v2494, %v2510
    %v2530 = vunpack.c.l.s4 1934713408
    %v2531 = vunpack.c.0.s8 %v2530
    %v2532 = vlaneseq
    %v2533 = vshrl.u32 %v2532, 7
    %v2534 = vsub.s32 %v2531, %v2533
    %v2535 = vrot.slane %v2527, %v2534
    %v2537 = vunpack.c.l.s4 1934713408
    %v2538 = vunpack.c.0.s8 %v2537
    %v2539 = vlaneseq
    %v2540 = vshrl.u32 %v2539, 7
    %v2541 = vsub.s32 %v2538, %v2540
    %v2542 = vrot.slane %v2528, %v2541
    %v2543 = vcombine.high %v2519, 0.0
    %v2544 = vcombine.high %v2526, 0.0
    %v2545 = vcombine.high %v2535, 0.0
    %v2546 = vcombine.high %v2542, 0.0
    %v2547 = vcombine.low %v2451, %v2458
    %v2549 = vunpack.c.l.s4 1983009808
    %v2550 = vunpack.c.0.s8 %v2549
    %v2551 = vlaneseq
    %v2552 = vshrl.u32 %v2551, 7
    %v2553 = vsub.s32 %v2550, %v2552
    %v2554 = vrot.slane %v2547, %v2553
    %v2555 = vcombine.low %v2475, %v2476
    %v2557 = vunpack.c.l.s4 1983009808
    %v2558 = vunpack.c.0.s8 %v2557
    %v2559 = vlaneseq
    %v2560 = vshrl.u32 %v2559, 7
    %v2561 = vsub.s32 %v2558, %v2560
    %v2562 = vrot.slane %v2555, %v2561
    %v2563 = vcombine.low %v2467, %v2474
    %v2565 = vunpack.c.l.s4 1983009808
    %v2566 = vunpack.c.0.s8 %v2565
    %v2567 = vlaneseq
    %v2568 = vshrl.u32 %v2567, 7
    %v2569 = vsub.s32 %v2566, %v2568
    %v2570 = vrot.slane %v2563, %v2569
    %v2571 = vcombine.low %v2477, %v2478
    %v2573 = vunpack.c.l.s4 1983009808
    %v2574 = vunpack.c.0.s8 %v2573
    %v2575 = vlaneseq
    %v2576 = vshrl.u32 %v2575, 7
    %v2577 = vsub.s32 %v2574, %v2576
    %v2578 = vrot.slane %v2571, %v2577
    %v2579 = vcombine.low %v2554, %v2562
    %v2580 = vcombine.high %v2554, %v2562
    %v2582 = vunpack.c.l.s4 1934713408
    %v2583 = vunpack.c.0.s8 %v2582
    %v2584 = vlaneseq
    %v2585 = vshrl.u32 %v2584, 7
    %v2586 = vsub.s32 %v2583, %v2585
    %v2587 = vrot.slane %v2579, %v2586
    %v2589 = vunpack.c.l.s4 1934713408
    %v2590 = vunpack.c.0.s8 %v2589
    %v2591 = vlaneseq
    %v2592 = vshrl.u32 %v2591, 7
    %v2593 = vsub.s32 %v2590, %v2592
    %v2594 = vrot.slane %v2580, %v2593
    %v2595 = vcombine.low %v2570, %v2578
    %v2596 = vcombine.high %v2570, %v2578
    %v2598 = vunpack.c.l.s4 1934713408
    %v2599 = vunpack.c.0.s8 %v2598
    %v2600 = vlaneseq
    %v2601 = vshrl.u32 %v2600, 7
    %v2602 = vsub.s32 %v2599, %v2601
    %v2603 = vrot.slane %v2595, %v2602
    %v2605 = vunpack.c.l.s4 1934713408
    %v2606 = vunpack.c.0.s8 %v2605
    %v2607 = vlaneseq
    %v2608 = vshrl.u32 %v2607, 7
    %v2609 = vsub.s32 %v2606, %v2608
    %v2610 = vrot.slane %v2596, %v2609
    %v2611 = vcombine.low %v2587, %v2603
    %v2612 = vcombine.high %v2587, %v2603
    %v2613 = vcombine.low %v2594, %v2610
    %v2614 = vcombine.high %v2594, %v2610
    %v2615 = vcombine.low %v2519, %v2526
    %v2617 = vunpack.c.l.s4 1983009808
    %v2618 = vunpack.c.0.s8 %v2617
    %v2619 = vlaneseq
    %v2620 = vshrl.u32 %v2619, 7
    %v2621 = vsub.s32 %v2618, %v2620
    %v2622 = vrot.slane %v2615, %v2621
    %v2623 = vcombine.low %v2543, %v2544
    %v2625 = vunpack.c.l.s4 1983009808
    %v2626 = vunpack.c.0.s8 %v2625
    %v2627 = vlaneseq
    %v2628 = vshrl.u32 %v2627, 7
    %v2629 = vsub.s32 %v2626, %v2628
    %v2630 = vrot.slane %v2623, %v2629
    %v2631 = vcombine.low %v2535, %v2542
    %v2633 = vunpack.c.l.s4 1983009808
    %v2634 = vunpack.c.0.s8 %v2633
    %v2635 = vlaneseq
    %v2636 = vshrl.u32 %v2635, 7
    %v2637 = vsub.s32 %v2634, %v2636
    %v2638 = vrot.slane %v2631, %v2637
    %v2639 = vcombine.low %v2545, %v2546
    %v2641 = vunpack.c.l.s4 1983009808
    %v2642 = vunpack.c.0.s8 %v2641
    %v2643 = vlaneseq
    %v2644 = vshrl.u32 %v2643, 7
    %v2645 = vsub.s32 %v2642, %v2644
    %v2646 = vrot.slane %v2639, %v2645
    %v2647 = vcombine.low %v2622, %v2630
    %v2648 = vcombine.high %v2622, %v2630
    %v2650 = vunpack.c.l.s4 1934713408
    %v2651 = vunpack.c.0.s8 %v2650
    %v2652 = vlaneseq
    %v2653 = vshrl.u32 %v2652, 7
    %v2654 = vsub.s32 %v2651, %v2653
    %v2655 = vrot.slane %v2647, %v2654
    %v2657 = vunpack.c.l.s4 1934713408
    %v2658 = vunpack.c.0.s8 %v2657
    %v2659 = vlaneseq
    %v2660 = vshrl.u32 %v2659, 7
    %v2661 = vsub.s32 %v2658, %v2660
    %v2662 = vrot.slane %v2648, %v2661
    %v2663 = vcombine.low %v2638, %v2646
    %v2664 = vcombine.high %v2638, %v2646
    %v2666 = vunpack.c.l.s4 1934713408
    %v2667 = vunpack.c.0.s8 %v2666
    %v2668 = vlaneseq
    %v2669 = vshrl.u32 %v2668, 7
    %v2670 = vsub.s32 %v2667, %v2669
    %v2671 = vrot.slane %v2663, %v2670
    %v2673 = vunpack.c.l.s4 1934713408
    %v2674 = vunpack.c.0.s8 %v2673
    %v2675 = vlaneseq
    %v2676 = vshrl.u32 %v2675, 7
    %v2677 = vsub.s32 %v2674, %v2676
    %v2678 = vrot.slane %v2664, %v2677
    %v2679 = vcombine.low %v2655, %v2671
    %v2680 = vcombine.high %v2655, %v2671
    %v2681 = vcombine.low %v2662, %v2678
    %v2682 = vcombine.high %v2662, %v2678
    %2685 = vrot.lane.b32.xlu0 %v2612, 8
    %v2686 = vpop.permute.xlu0 %2685
    %2687 = vrot.lane.b32.xlu0 %v2680, 8
    %v2688 = vpop.permute.xlu0 %2687
    %2693 = vrot.lane.b32.xlu0 %v2613, 16
    %v2694 = vpop.permute.xlu0 %2693
    %2695 = vrot.lane.b32.xlu0 %v2681, 16
    %v2696 = vpop.permute.xlu0 %2695
    %2701 = vrot.lane.b32.xlu0 %v2614, 24
    %v2702 = vpop.permute.xlu0 %2701
    %2703 = vrot.lane.b32.xlu0 %v2682, 24
    %v2704 = vpop.permute.xlu0 %2703
    %v2707 = vsel %vm1122, %v2611, %v2686
    %v2708 = vsel %vm1122, %v2679, %v2688
    %vm2709 = vcmask 130048
    %v2710 = vsel %vm2709, %v2707, %v2694
    %v2711 = vsel %vm2709, %v2708, %v2696
    %vm2712 = vcmask 195584
    %v2713 = vsel %vm2712, %v2710, %v2702
    %v2714 = vsel %vm2712, %v2711, %v2704
    %v2715 = vld [vmem:[%s4] sm:$0xff]
    %v2716 = vld [vmem:[%s4 + $0x8] sm:$0xff]
    %v2717 = vld [vmem:[%s4 + $0x10] sm:$0xff]
    %v2718 = vld [vmem:[%s4 + $0x18] sm:$0xff]
    %v2719 = vld [vmem:[%s5] sm:$0x1]
    %v2721 = vlaneseq
    %v2722 = vshrl.u32 %v2721, 7
    %v2723 = vsub.s32 0, %v2722
    %v2724 = vrot.slane %v2719, %v2723
    %v2727 = vsel %vm88, %v2713, 0
    %v2730 = vsel %vm88, %v2714, 0
    %2732 = vmatprep.subr.mxu0 0.0
    %2733 = vmatpush1.msra.mxu0 0.0
    %2734 = vmatprep.subr.mxu0 0.0
    %2735 = vmatpush1.msra.mxu0 0.0
    %2736 = vmatprep.subr.mxu0 0.0
    %2737 = vmatpush1.msra.mxu0 0.0
    %2738 = vmatprep.subr.mxu0 0.0
    %2739 = vmatpush1.msra.mxu0 0.0
    %2740 = vmatprep.subr.mxu0 0.0
    %2741 = vmatpush1.msra.mxu0 0.0
    %2742 = vmatprep.subr.mxu0 0.0
    %2743 = vmatpush1.msra.mxu0 0.0
    %2744 = vmatprep.subr.mxu0 0.0
    %2745 = vmatpush1.msra.mxu0 0.0
    %2746 = vmatprep.subr.mxu0 0.0
    %2747 = vmatpush1.msra.mxu0 0.0
    %2748 = vmatprep.subr.mxu0 0.0
    %2749 = vmatpush1.msra.mxu0 0.0
    %2750 = vmatprep.subr.mxu0 0.0
    %2751 = vmatpush1.msra.mxu0 0.0
    %2752 = vmatprep.subr.mxu0 0.0
    %2753 = vmatpush1.msra.mxu0 0.0
    %2754 = vmatprep.subr.mxu0 0.0
    %2755 = vmatpush1.msra.mxu0 0.0
    %2756 = vmatprep.subr.mxu0 0.0
    %2757 = vmatpush1.msra.mxu0 %v2718
    %2758 = vmatprep.subr.mxu0 0.0
    %2759 = vmatpush1.msra.mxu0 %v2717
    %2760 = vmatprep.subr.mxu0 0.0
    %2761 = vmatpush1.msra.mxu0 %v2716
    %2762 = vmatprep.subr.mxu0 0.0
    %2763 = vmatpush1.msra.mxu0 %v2715
    %2764 = vmatprep.subr.mxu0 0.0
    %2765 = vmatpush2.msra.mxu0 0.0
    %2766 = vmatprep.subr.mxu0 0.0
    %2767 = vmatpush2.msra.mxu0 0.0
    %2768 = vmatprep.subr.mxu0 0.0
    %2769 = vmatpush2.msra.mxu0 0.0
    %2770 = vmatprep.subr.mxu0 0.0
    %2771 = vmatpush2.msra.mxu0 0.0
    %2772 = vmatprep.subr.mxu0 0.0
    %2773 = vmatpush2.msra.mxu0 0.0
    %2774 = vmatprep.subr.mxu0 0.0
    %2775 = vmatpush2.msra.mxu0 0.0
    %2776 = vmatprep.subr.mxu0 0.0
    %2777 = vmatpush2.msra.mxu0 0.0
    %2778 = vmatprep.subr.mxu0 0.0
    %2779 = vmatpush2.msra.mxu0 0.0
    %2780 = vmatprep.subr.mxu0 0.0
    %2781 = vmatpush2.msra.mxu0 0.0
    %2782 = vmatprep.subr.mxu0 0.0
    %2783 = vmatpush2.msra.mxu0 0.0
    %2784 = vmatprep.subr.mxu0 0.0
    %2785 = vmatpush2.msra.mxu0 0.0
    %2786 = vmatprep.subr.mxu0 0.0
    %2787 = vmatpush2.msra.mxu0 0.0
    %2788 = vmatprep.subr.mxu0 0.0
    %2789 = vmatpush2.msra.mxu0 0.0
    %2790 = vmatprep.subr.mxu0 0.0
    %2791 = vmatpush2.msra.mxu0 0.0
    %2792 = vmatprep.subr.mxu0 0.0
    %2793 = vmatpush2.msra.mxu0 0.0
    %2794 = vmatprep.subr.mxu0 0.0
    %2795 = vmatpush2.msra.mxu0 0.0
    %2796 = vmatprep.mubr.f32.mxu0 0.0
    %2797 = vmatmul.mubr.f32.gmra.mxu0 %v2727
    %v2798 = vpop.f32.mrf.mxu0
    %v2799 = vadd.f32 %v2724, %v2798
    %v2800 = vpop.f32.mrf.mxu0
    %2801 = vmatprep.mubr.f32.mxu0 0.0
    %2802 = vmatmul.mubr.f32.gmra.mxu0 %v2730
    %v2803 = vpop.f32.mrf.mxu0
    %v2804 = vadd.f32 %v2724, %v2803
    %v2805 = vpop.f32.mrf.mxu0
    %2806 = vdwg.mxu0
    %v2807 = vadd.f32 %v76, %v2799
    %v2808 = vadd.f32 %v77, %v2804
    %v2809 = vld [vmem:[%s8] sm:$0x1]
    %v2810 = vld [vmem:[%s9] sm:$0x1]
    %v2811 = vsel %vm88, %v2807, 0.0
    %2812 = vadd.xlane.f32.xlu0 %v2811
    %v2813 = vpop.xlane.xlu0 %2812
    %v2814 = vsel %vm88, %v2808, 0.0
    %2815 = vadd.xlane.f32.xlu0 %v2814
    %v2816 = vpop.xlane.xlu0 %2815
    %v2817 = vmul.f32 %v2813, %v95
    %v2818 = vmul.f32 %v2816, %v95
    %v2819 = vsub.f32 %v2807, %v2817
    %v2820 = vsub.f32 %v2808, %v2818
    %v2821 = vmul.f32 %v2819, %v2819
    %v2822 = vmul.f32 %v2820, %v2820
    %v2823 = vsel %vm88, %v2821, 0.0
    %2824 = vadd.xlane.f32.xlu0 %v2823
    %v2825 = vpop.xlane.xlu0 %2824
    %v2826 = vsel %vm88, %v2822, 0.0
    %2827 = vadd.xlane.f32.xlu0 %v2826
    %v2828 = vpop.xlane.xlu0 %2827
    %v2829 = vmul.f32 %v2825, 0.032258064
    %v2830 = vmul.f32 %v2828, 0.032258064
    %v2831 = vrsqrt.pop %v2829
    %v2832 = vmul.f32 %v2829, %v2831
    %vm2833 = vcmp.eq.f32.partialorder %v2829, inf
    %v2834 = vsel %vm2833, %v2829, %v2832
    %vm2835 = vcmp.eq.f32.partialorder %v2829, 0.0
    %v2836 = vand.u32 %v2829, 2147483648
    %v2837 = vsel %vm2835, %v2836, %v2834
    %v2838 = vrsqrt.pop %v2830
    %v2839 = vmul.f32 %v2830, %v2838
    %vm2840 = vcmp.eq.f32.partialorder %v2830, inf
    %v2841 = vsel %vm2840, %v2830, %v2839
    %vm2842 = vcmp.eq.f32.partialorder %v2830, 0.0
    %v2843 = vand.u32 %v2830, 2147483648
    %v2844 = vsel %vm2842, %v2843, %v2841
    %v2845 = vadd.f32 %v2837, 1e-06
    %v2846 = vadd.f32 %v2844, 1e-06
    %v2847 = vrcp.pop %v2845
    %v2848 = vrcp.pop %v2846
    %v2850 = vlaneseq
    %v2851 = vshrl.u32 %v2850, 7
    %v2852 = vsub.s32 0, %v2851
    %v2853 = vrot.slane %v2809, %v2852
    %v2855 = vmul.f32 %v2853, %v2819
    %v2856 = vmul.f32 %v2853, %v2820
    %v2857 = vmul.f32 %v2855, %v2847
    %v2858 = vmul.f32 %v2856, %v2848
    %v2860 = vlaneseq
    %v2861 = vshrl.u32 %v2860, 7
    %v2862 = vsub.s32 0, %v2861
    %v2863 = vrot.slane %v2810, %v2862
    %v2865 = vadd.f32 %v2857, %v2863
    %v2866 = vadd.f32 %v2858, %v2863
    %v2867 = vld [vmem:[%s10] sm:$0xff]
    %v2868 = vld [vmem:[%s10 + $0x8] sm:$0xff]
    %v2869 = vld [vmem:[%s10 + $0x10] sm:$0xff]
    %v2870 = vld [vmem:[%s10 + $0x18] sm:$0xff]
    %v2871 = vld [vmem:[%s11] sm:$0x1]
    %v2873 = vlaneseq
    %v2874 = vshrl.u32 %v2873, 7
    %v2875 = vsub.s32 0, %v2874
    %v2876 = vrot.slane %v2871, %v2875
    %v2879 = vsel %vm88, %v2865, 0
    %v2882 = vsel %vm88, %v2866, 0
    %2884 = vmatprep.subr.mxu0 0.0
    %2885 = vmatpush1.msra.mxu0 0.0
    %2886 = vmatprep.subr.mxu0 0.0
    %2887 = vmatpush1.msra.mxu0 0.0
    %2888 = vmatprep.subr.mxu0 0.0
    %2889 = vmatpush1.msra.mxu0 0.0
    %2890 = vmatprep.subr.mxu0 0.0
    %2891 = vmatpush1.msra.mxu0 0.0
    %2892 = vmatprep.subr.mxu0 0.0
    %2893 = vmatpush1.msra.mxu0 0.0
    %2894 = vmatprep.subr.mxu0 0.0
    %2895 = vmatpush1.msra.mxu0 0.0
    %2896 = vmatprep.subr.mxu0 0.0
    %2897 = vmatpush1.msra.mxu0 0.0
    %2898 = vmatprep.subr.mxu0 0.0
    %2899 = vmatpush1.msra.mxu0 0.0
    %2900 = vmatprep.subr.mxu0 0.0
    %2901 = vmatpush1.msra.mxu0 0.0
    %2902 = vmatprep.subr.mxu0 0.0
    %2903 = vmatpush1.msra.mxu0 0.0
    %2904 = vmatprep.subr.mxu0 0.0
    %2905 = vmatpush1.msra.mxu0 0.0
    %2906 = vmatprep.subr.mxu0 0.0
    %2907 = vmatpush1.msra.mxu0 0.0
    %2908 = vmatprep.subr.mxu0 0.0
    %2909 = vmatpush1.msra.mxu0 %v2870
    %2910 = vmatprep.subr.mxu0 0.0
    %2911 = vmatpush1.msra.mxu0 %v2869
    %2912 = vmatprep.subr.mxu0 0.0
    %2913 = vmatpush1.msra.mxu0 %v2868
    %2914 = vmatprep.subr.mxu0 0.0
    %2915 = vmatpush1.msra.mxu0 %v2867
    %2916 = vmatprep.subr.mxu0 0.0
    %2917 = vmatpush2.msra.mxu0 0.0
    %2918 = vmatprep.subr.mxu0 0.0
    %2919 = vmatpush2.msra.mxu0 0.0
    %2920 = vmatprep.subr.mxu0 0.0
    %2921 = vmatpush2.msra.mxu0 0.0
    %2922 = vmatprep.subr.mxu0 0.0
    %2923 = vmatpush2.msra.mxu0 0.0
    %2924 = vmatprep.subr.mxu0 0.0
    %2925 = vmatpush2.msra.mxu0 0.0
    %2926 = vmatprep.subr.mxu0 0.0
    %2927 = vmatpush2.msra.mxu0 0.0
    %2928 = vmatprep.subr.mxu0 0.0
    %2929 = vmatpush2.msra.mxu0 0.0
    %2930 = vmatprep.subr.mxu0 0.0
    %2931 = vmatpush2.msra.mxu0 0.0
    %2932 = vmatprep.subr.mxu0 0.0
    %2933 = vmatpush2.msra.mxu0 0.0
    %2934 = vmatprep.subr.mxu0 0.0
    %2935 = vmatpush2.msra.mxu0 0.0
    %2936 = vmatprep.subr.mxu0 0.0
    %2937 = vmatpush2.msra.mxu0 0.0
    %2938 = vmatprep.subr.mxu0 0.0
    %2939 = vmatpush2.msra.mxu0 0.0
    %2940 = vmatprep.subr.mxu0 0.0
    %2941 = vmatpush2.msra.mxu0 0.0
    %2942 = vmatprep.subr.mxu0 0.0
    %2943 = vmatpush2.msra.mxu0 0.0
    %2944 = vmatprep.subr.mxu0 0.0
    %2945 = vmatpush2.msra.mxu0 0.0
    %2946 = vmatprep.subr.mxu0 0.0
    %2947 = vmatpush2.msra.mxu0 0.0
    %2948 = vmatprep.mubr.f32.mxu0 0.0
    %2949 = vmatmul.mubr.f32.gmra.mxu0 %v2879
    %v2950 = vpop.f32.mrf.mxu0
    %v2951 = vadd.f32 %v2876, %v2950
    %v2952 = vpop.f32.mrf.mxu0
    %2953 = vmatprep.mubr.f32.mxu0 0.0
    %2954 = vmatmul.mubr.f32.gmra.mxu0 %v2882
    %v2955 = vpop.f32.mrf.mxu0
    %v2956 = vadd.f32 %v2876, %v2955
    %v2957 = vpop.f32.mrf.mxu0
    %2958 = vdwg.mxu0
    %v2959 = vmax.f32 %v2951, 0.0
    %v2960 = vmax.f32 %v2956, 0.0
    %v2961 = vld [vmem:[%s12] sm:$0xff]
    %v2962 = vld [vmem:[%s12 + $0x8] sm:$0xff]
    %v2963 = vld [vmem:[%s12 + $0x10] sm:$0xff]
    %v2964 = vld [vmem:[%s12 + $0x18] sm:$0xff]
    %v2965 = vld [vmem:[%s12 + $0x20] sm:$0xff]
    %v2966 = vld [vmem:[%s12 + $0x28] sm:$0xff]
    %v2967 = vld [vmem:[%s12 + $0x30] sm:$0xff]
    %v2968 = vld [vmem:[%s12 + $0x38] sm:$0xff]
    %v2969 = vld [vmem:[%s13] sm:$0x1]
    %v2971 = vlaneseq
    %v2972 = vshrl.u32 %v2971, 7
    %v2973 = vsub.s32 0, %v2972
    %v2974 = vrot.slane %v2969, %v2973
    %vm2976 = vcmask 523264
    %v2978 = vsel %vm2976, %v2959, 0
    %v2981 = vsel %vm2976, %v2960, 0
    %2983 = vmatprep.subr.mxu0 0.0
    %2984 = vmatpush1.msra.mxu0 0.0
    %2985 = vmatprep.subr.mxu0 0.0
    %2986 = vmatpush1.msra.mxu0 0.0
    %2987 = vmatprep.subr.mxu0 0.0
    %2988 = vmatpush1.msra.mxu0 0.0
    %2989 = vmatprep.subr.mxu0 0.0
    %2990 = vmatpush1.msra.mxu0 0.0
    %2991 = vmatprep.subr.mxu0 0.0
    %2992 = vmatpush1.msra.mxu0 0.0
    %2993 = vmatprep.subr.mxu0 0.0
    %2994 = vmatpush1.msra.mxu0 0.0
    %2995 = vmatprep.subr.mxu0 0.0
    %2996 = vmatpush1.msra.mxu0 0.0
    %2997 = vmatprep.subr.mxu0 0.0
    %2998 = vmatpush1.msra.mxu0 0.0
    %2999 = vmatprep.subr.mxu0 0.0
    %3000 = vmatpush1.msra.mxu0 %v2968
    %3001 = vmatprep.subr.mxu0 0.0
    %3002 = vmatpush1.msra.mxu0 %v2967
    %3003 = vmatprep.subr.mxu0 0.0
    %3004 = vmatpush1.msra.mxu0 %v2966
    %3005 = vmatprep.subr.mxu0 0.0
    %3006 = vmatpush1.msra.mxu0 %v2965
    %3007 = vmatprep.subr.mxu0 0.0
    %3008 = vmatpush1.msra.mxu0 %v2964
    %3009 = vmatprep.subr.mxu0 0.0
    %3010 = vmatpush1.msra.mxu0 %v2963
    %3011 = vmatprep.subr.mxu0 0.0
    %3012 = vmatpush1.msra.mxu0 %v2962
    %3013 = vmatprep.subr.mxu0 0.0
    %3014 = vmatpush1.msra.mxu0 %v2961
    %3015 = vmatprep.subr.mxu0 0.0
    %3016 = vmatpush2.msra.mxu0 0.0
    %3017 = vmatprep.subr.mxu0 0.0
    %3018 = vmatpush2.msra.mxu0 0.0
    %3019 = vmatprep.subr.mxu0 0.0
    %3020 = vmatpush2.msra.mxu0 0.0
    %3021 = vmatprep.subr.mxu0 0.0
    %3022 = vmatpush2.msra.mxu0 0.0
    %3023 = vmatprep.subr.mxu0 0.0
    %3024 = vmatpush2.msra.mxu0 0.0
    %3025 = vmatprep.subr.mxu0 0.0
    %3026 = vmatpush2.msra.mxu0 0.0
    %3027 = vmatprep.subr.mxu0 0.0
    %3028 = vmatpush2.msra.mxu0 0.0
    %3029 = vmatprep.subr.mxu0 0.0
    %3030 = vmatpush2.msra.mxu0 0.0
    %3031 = vmatprep.subr.mxu0 0.0
    %3032 = vmatpush2.msra.mxu0 0.0
    %3033 = vmatprep.subr.mxu0 0.0
    %3034 = vmatpush2.msra.mxu0 0.0
    %3035 = vmatprep.subr.mxu0 0.0
    %3036 = vmatpush2.msra.mxu0 0.0
    %3037 = vmatprep.subr.mxu0 0.0
    %3038 = vmatpush2.msra.mxu0 0.0
    %3039 = vmatprep.subr.mxu0 0.0
    %3040 = vmatpush2.msra.mxu0 0.0
    %3041 = vmatprep.subr.mxu0 0.0
    %3042 = vmatpush2.msra.mxu0 0.0
    %3043 = vmatprep.subr.mxu0 0.0
    %3044 = vmatpush2.msra.mxu0 0.0
    %3045 = vmatprep.subr.mxu0 0.0
    %3046 = vmatpush2.msra.mxu0 0.0
    %3047 = vmatprep.mubr.f32.mxu0 0.0
    %3048 = vmatmul.mubr.f32.gmra.mxu0 %v2978
    %v3049 = vpop.f32.mrf.mxu0
    %v3050 = vadd.f32 %v2974, %v3049
    %v3051 = vpop.f32.mrf.mxu0
    %3052 = vmatprep.mubr.f32.mxu0 0.0
    %3053 = vmatmul.mubr.f32.gmra.mxu0 %v2981
    %v3054 = vpop.f32.mrf.mxu0
    %v3055 = vadd.f32 %v2974, %v3054
    %v3056 = vpop.f32.mrf.mxu0
    %3057 = vdwg.mxu0
    %v3058 = vadd.f32 %v2807, %v3050
    %v3059 = vadd.f32 %v2808, %v3055
    %3060 = vst.msk [vmem:[#allocation7] sm:$0xff] %vm88, %v3058
    %3061 = vst.msk [vmem:[#allocation7 + $0x8] sm:$0xff] %vm88, %v3059
    // Predicated region
    $region66: #{tpu_custom_call.1} parent=1 // pred_check
      _
    $region67: #{tpu_custom_call.1} parent=1 // pred_check_branch
      %3063 = sbr.rel (0) target = $region69
    $region68: #{tpu_custom_call.1} parent=1 // pred_region
      %s3065 = ssub.s32 256, 256
      %3066 = vsyncadd [#allocation4], %s3065
      %s3067 = sshll.u32 [#allocation7], 4
      %s3068 = int_to_ptr.vmem [resolvable:$true] %s3067
      %3073 = dma.vmem_to_hbm [thread:$0]  %s3068, 256, %s14, [#allocation4], 128, 128, 8
    $region69: #{tpu_custom_call.1} parent=1 // pred_fallthru
      _
    // Predicated region
    $region70: #{tpu_custom_call.1} parent=1 // pred_check
      _
    $region71: #{tpu_custom_call.1} parent=1 // pred_check_branch
      %3075 = sbr.rel (0) target = $region73
    $region72: #{tpu_custom_call.1} parent=1 // pred_region
      %3076 = dma.done [#allocation4], 256
    $region73: #{tpu_custom_call.1} parent=1 // pred_fallthru
      _
    %3077 = vsyncpa [#allocation3], 1
    %3078 = vsyncpa [#allocation6], 1
    %3079 = vsyncpa [#allocation4], 1

</llo_original>
